<compile_context>
chip_gen: v6e
topology: v6e:2x2x1
jax: 0.10.0
libtpu: 0.0.40
codegen_flags: <defaults>
</compile_context>

<pallas_src>
import functools
import math

import jax
import jax.numpy as jnp
from jax.experimental import pallas as pl
from jax.experimental.pallas import tpu as pltpu


# ----------------------------------------------------------------- fused Pallas kernel
def _make_sparse_mhat_kernel(h, T_, C, d_k):
    def kernel(xg_ref, wqkv_ref, bqkv_ref, wo_ref, bo_ref, o_ref):
        # xg_ref : (T_, C)    tokens of ONE (batch, stride-class) pair
        # wqkv   : (C, 3C)    [Wq.T * 1/sqrt(d_k) | Wk.T | Wv.T]   (bf16)
        # bqkv   : (1, 3C)    [bq * 1/sqrt(d_k) | bk | bv]         (f32)
        # wo     : (C, C)     Wo.T                                 (bf16)
        # bo     : (1, C)     output bias                          (f32)
        xb = xg_ref[...].astype(jnp.bfloat16)                    # bf16 MXU operands

        # --- fused Q/K/V projection: one lane-dense matmul, f32 accumulation -------
        qkv = jnp.dot(xb, wqkv_ref[...],
                      preferred_element_type=jnp.float32) + bqkv_ref[...]   # (T_, 3C)
        qkv = qkv.astype(jnp.bfloat16)

        # head split (lane-dim reshape only where the score/PV matmuls need it)
        q = qkv[:, 0 * C:1 * C].reshape(T_, h, d_k)              # scale already in Wq
        k = qkv[:, 1 * C:2 * C].reshape(T_, h, d_k)
        v = qkv[:, 2 * C:3 * C].reshape(T_, h, d_k)

        # --- per-head attention inside the stride class (softmax in f32) -----------
        s = jnp.einsum('qhd,khd->hqk', q, k,
                       preferred_element_type=jnp.float32)       # (h, T_, T_)
        s = s - jnp.max(s, axis=-1, keepdims=True)
        e = jnp.exp(s)
        p = e * pl.reciprocal(jnp.sum(e, axis=-1, keepdims=True), approx=True)
        o = jnp.einsum('hqk,khd->qhd', p.astype(jnp.bfloat16), v,
                       preferred_element_type=jnp.float32)       # (T_, h, d_k)

        # --- output projection: heads folded back into lanes, one (C x C) matmul ---
        oc = o.reshape(T_, C).astype(jnp.bfloat16)               # columns = (head, d_k)
        out = jnp.dot(oc, wo_ref[...],
                      preferred_element_type=jnp.float32) + bo_ref[...]
        o_ref[...] = out.astype(o_ref.dtype)                     # (T_, C), lane-dense

    return kernel


# ----------------------------------------------------------------- host-side weight prep
def prepare_params(params, *, h):
    """One-time rearrangement of the 4 nn.Linear weights (outside the jitted forward)."""
    Wq, bq, Wk, bk, Wv, bv, Wo, bo = params
    C = Wq.shape[0]
    d_k = C // h
    inv = 1.0 / math.sqrt(d_k)
    # nn.Linear: y = x @ W.T + b.  Concatenate Q/K/V along the output dim -> one
    # lane-dense (C, 3C) matmul; fold the 1/sqrt(d_k) score scale into Wq / bq.
    wqkv = jnp.concatenate([Wq.T * inv, Wk.T, Wv.T], axis=1).astype(jnp.bfloat16)  # (C,3C)
    bqkv = jnp.concatenate([bq * inv, bk, bv]).reshape(1, 3 * C).astype(jnp.float32)
    wo_t = Wo.T.astype(jnp.bfloat16)                                               # (C, C)
    bo2 = bo.reshape(1, C).astype(jnp.float32)
    return wqkv, bqkv, wo_t, bo2


# ----------------------------------------------------------------- forward (Pallas)
def sparse_mhat_forward(x, prepped, *, h, M):
    wqkv, bqkv, wo_t, bo2 = prepped
    N, T, C = x.shape
    assert T % M == 0, "TODO(synk): len % M != 0 trim/pad branch not implemented"
    T_ = T // M
    d_k = C // h

    kernel = _make_sparse_mhat_kernel(h, T_, C, d_k)
    weight_specs = [
        pl.BlockSpec((C, 3 * C), lambda n, g: (0, 0)),
        pl.BlockSpec((1, 3 * C), lambda n, g: (0, 0)),
        pl.BlockSpec((C, C), lambda n, g: (0, 0)),
        pl.BlockSpec((1, C), lambda n, g: (0, 0)),
    ]
    cparams = pltpu.CompilerParams(dimension_semantics=("parallel", "parallel"))

    if C % 128 == 0:
        # Free reshape: (N, T, C) == (N, T_, M*C).  Columns [g*C:(g+1)*C] of row j are
        # exactly token j*M + g, so a column-block BlockSpec does the stride-class
        # de-interleave in the DMA itself — no HBM transpose on either side.
        x_v = x.reshape(N, T_, M * C)
        out_v = pl.pallas_call(
            kernel,
            grid=(N, M),
            in_specs=[pl.BlockSpec((None, T_, C), lambda n, g: (n, 0, g))] + weight_specs,
            out_specs=pl.BlockSpec((None, T_, C), lambda n, g: (n, 0, g)),
            out_shape=jax.ShapeDtypeStruct((N, T_, M * C), jnp.float32),
            compiler_params=cparams,
        )(x_v, wqkv, bqkv, wo_t, bo2)
        return out_v.reshape(N, T, C)                            # free reshape back

    # Fallback for C not a multiple of 128: group-major layout via wrapper transpose
    # (same kernel, contiguous (T_, C) blocks).
    xg = x.reshape(N, T_, M, C).transpose(0, 2, 1, 3)            # (N, M, T_, C)
    out_g = pl.pallas_call(
        kernel,
        grid=(N, M),
        in_specs=[pl.BlockSpec((None, None, T_, C), lambda n, g: (n, g, 0, 0))]
                 + weight_specs,
        out_specs=pl.BlockSpec((None, None, T_, C), lambda n, g: (n, g, 0, 0)),
        out_shape=jax.ShapeDtypeStruct((N, M, T_, C), jnp.float32),
        compiler_params=cparams,
    )(xg, wqkv, bqkv, wo_t, bo2)
    return out_g.transpose(0, 2, 1, 3).reshape(N, T, C)


# ----------------------------------------------------------------- pure-JAX reference
def sparse_mhat_reference(x, params, *, h, M):
    Wq, bq, Wk, bk, Wv, bv, Wo, bo = params
    N, T, C = x.shape
    d_k = C // h
    with jax.default_matmul_precision("highest"):
        q = (x @ Wq.T + bq).reshape(N, T, h, d_k).transpose(0, 2, 1, 3)
        k = (x @ Wk.T + bk).reshape(N, T, h, d_k).transpose(0, 2, 1, 3)
        v = (x @ Wv.T + bv).reshape(N, T, h, d_k).transpose(0, 2, 1, 3)
        out = jnp.zeros((N, T, C), x.dtype)
        for i in range(M):
            qi, ki, vi = q[:, :, i::M, :], k[:, :, i::M, :], v[:, :, i::M, :]
            s = jnp.einsum('nhqd,nhkd->nhqk', qi, ki) / math.sqrt(d_k)
            p = jax.nn.softmax(s, axis=-1)
            oi = jnp.einsum('nhqk,nhkd->nhqd', p, vi)
            oi = oi.transpose(0, 2, 1, 3).reshape(N, -1, C)
            out = out.at[:, i::M, :].set(oi)
        return out @ Wo.T + bo


# ----------------------------------------------------------------- main
if __name__ == "__main__":
    # Sparse_MHAT(h=4, d_model=128, M=4); x: (N=2, T=T_*M=32, C=128)
    N, T_, M, C, h = 2, 8, 4, 128, 4
    T = T_ * M

    key = jax.random.PRNGKey(0)
    ks = jax.random.split(key, 9)
    x = jax.random.normal(ks[0], (N, T, C), dtype=jnp.float32)
    Wq, Wk, Wv, Wo = [0.05 * jax.random.normal(k, (C, C), dtype=jnp.float32) for k in ks[1:5]]
    bq, bk, bv, bo = [0.05 * jax.random.normal(k, (C,), dtype=jnp.float32) for k in ks[5:9]]
    params = (Wq, bq, Wk, bk, Wv, bv, Wo, bo)

    prepped = prepare_params(params, h=h)                 # once, outside the jitted fwd
    fwd = jax.jit(functools.partial(sparse_mhat_forward, h=h, M=M))

    out = jax.block_until_ready(fwd(x, prepped))

    ref = sparse_mhat_reference(x, params, h=h, M=M)
    assert out.shape == (N, T, C)
    # Tolerance reflects bf16 MXU operands (kernel) vs. "highest"-precision reference.
    max_err = float(jnp.max(jnp.abs(out - ref)))
    assert max_err < 3e-2, f"mismatch vs reference: {max_err}"

    print("KERNEL_OK")
</pallas_src>

<mosaic_0001>
module attributes {stable_mosaic.version = 11 : i64} {
  func.func @kernel(%arg0: i32, %arg1: i32, %arg2: memref<1x8x128xf32, #tpu.memory_space<vmem>>, %arg3: memref<128x384xbf16, #tpu.memory_space<vmem>>, %arg4: memref<1x384xf32, #tpu.memory_space<vmem>>, %arg5: memref<128x128xbf16, #tpu.memory_space<vmem>>, %arg6: memref<1x128xf32, #tpu.memory_space<vmem>>, %arg7: memref<1x8x128xf32, #tpu.memory_space<vmem>>) attributes {dimension_semantics = [#tpu.dimension_semantics<parallel>, #tpu.dimension_semantics<parallel>], iteration_bounds = array<i64: 2, 4>, scalar_prefetch = 0 : i64, scratch_operands = 0 : i64, tpu.core_type = #tpu.core_type<tc>, window_params = [{transform_indices = @transform_0, window_bounds = array<i64: 1, 8, 128>}, {pipeline_mode = #tpu.pipeline_mode<synchronous>, transform_indices = @transform_1, window_bounds = array<i64: 128, 384>}, {pipeline_mode = #tpu.pipeline_mode<synchronous>, transform_indices = @transform_2, window_bounds = array<i64: 1, 384>}, {pipeline_mode = #tpu.pipeline_mode<synchronous>, transform_indices = @transform_3, window_bounds = array<i64: 128, 128>}, {pipeline_mode = #tpu.pipeline_mode<synchronous>, transform_indices = @transform_4, window_bounds = array<i64: 1, 128>}, {transform_indices = @transform_5, window_bounds = array<i64: 1, 8, 128>}]} {
    %c0 = arith.constant 0 : index
    %c0_0 = arith.constant 0 : index
    %c0_1 = arith.constant 0 : index
    %0 = vector.load %arg2[%c0, %c0_0, %c0_1] : memref<1x8x128xf32, #tpu.memory_space<vmem>>, vector<1x8x128xf32>
    %1 = vector.shape_cast %0 : vector<1x8x128xf32> to vector<8x128xf32>
    %2 = arith.truncf %1 : vector<8x128xf32> to vector<8x128xbf16>
    %c0_2 = arith.constant 0 : index
    %c0_3 = arith.constant 0 : index
    %3 = vector.load %arg3[%c0_2, %c0_3] : memref<128x384xbf16, #tpu.memory_space<vmem>>, vector<128x384xbf16>
    %cst = arith.constant dense<0.000000e+00> : vector<8x384xf32>
    %4 = tpu.matmul %2, %3, %cst {dimension_numbers = #tpu.dot_dimension_numbers<[1], [0], [0], [1], [0, 0, 1, 1], [], []>} : vector<8x128xbf16>, vector<128x384xbf16>, vector<8x384xf32> -> vector<8x384xf32>
    %c0_4 = arith.constant 0 : index
    %c0_5 = arith.constant 0 : index
    %5 = vector.load %arg4[%c0_4, %c0_5] : memref<1x384xf32, #tpu.memory_space<vmem>>, vector<1x384xf32>
    %6 = vector.broadcast %5 : vector<1x384xf32> to vector<8x384xf32>
    %7 = arith.addf %4, %6 : vector<8x384xf32>
    %8 = arith.truncf %7 : vector<8x384xf32> to vector<8x384xbf16>
    %9 = vector.extract_strided_slice %8 {offsets = [0, 0], sizes = [8, 128], strides = [1, 1]} : vector<8x384xbf16> to vector<8x128xbf16>
    %10 = vector.shape_cast %9 : vector<8x128xbf16> to vector<8x4x32xbf16>
    %11 = vector.extract_strided_slice %8 {offsets = [0, 128], sizes = [8, 128], strides = [1, 1]} : vector<8x384xbf16> to vector<8x128xbf16>
    %12 = vector.shape_cast %11 : vector<8x128xbf16> to vector<8x4x32xbf16>
    %13 = vector.extract_strided_slice %8 {offsets = [0, 256], sizes = [8, 128], strides = [1, 1]} : vector<8x384xbf16> to vector<8x128xbf16>
    %14 = vector.shape_cast %13 : vector<8x128xbf16> to vector<8x4x32xbf16>
    "tpu.trace_start"() <{level = 10 : i32, message = "qhd,khd->hqk"}> : () -> ()
    %cst_6 = arith.constant dense<0.000000e+00> : vector<4x8x8xf32>
    %15 = tpu.matmul %10, %12, %cst_6 {dimension_numbers = #tpu.dot_dimension_numbers<[2], [2], [0], [0], [0, 1, 0, 0, 1, 0], [1], [1]>} : vector<8x4x32xbf16>, vector<8x4x32xbf16>, vector<4x8x8xf32> -> vector<4x8x8xf32>
    "tpu.trace_stop"() : () -> ()
    %cst_7 = arith.constant dense<0xFF800000> : vector<4x8xf32>
    %16 = vector.multi_reduction <maximumf>, %15, %cst_7 [2] : vector<4x8x8xf32> to vector<4x8xf32>
    %17 = vector.shape_cast %16 : vector<4x8xf32> to vector<4x8x1xf32>
    %18 = vector.broadcast %17 : vector<4x8x1xf32> to vector<4x8x8xf32>
    %19 = arith.subf %15, %18 : vector<4x8x8xf32>
    %20 = math.exp %19 : vector<4x8x8xf32>
    %cst_8 = arith.constant dense<0.000000e+00> : vector<4x8xf32>
    %21 = vector.multi_reduction <add>, %20, %cst_8 [2] : vector<4x8x8xf32> to vector<4x8xf32>
    %22 = vector.shape_cast %21 : vector<4x8xf32> to vector<4x8x1xf32>
    %23 = tpu.reciprocal %22 {approx = true} : vector<4x8x1xf32> -> vector<4x8x1xf32>
    %24 = vector.broadcast %23 : vector<4x8x1xf32> to vector<4x8x8xf32>
    %25 = arith.mulf %20, %24 : vector<4x8x8xf32>
    %26 = arith.truncf %25 : vector<4x8x8xf32> to vector<4x8x8xbf16>
    "tpu.trace_start"() <{level = 10 : i32, message = "hqk,khd->qhd"}> : () -> ()
    %cst_9 = arith.constant dense<0.000000e+00> : vector<4x32x8xf32>
    %27 = tpu.matmul %14, %26, %cst_9 {dimension_numbers = #tpu.dot_dimension_numbers<[0], [2], [2], [1], [0, 1, 0, 2, 1, 1], [1], [0]>} : vector<8x4x32xbf16>, vector<4x8x8xbf16>, vector<4x32x8xf32> -> vector<4x32x8xf32>
    %28 = tpu.transpose %27, [2, 0, 1] : vector<4x32x8xf32> -> vector<8x4x32xf32>
    "tpu.trace_stop"() : () -> ()
    %29 = vector.shape_cast %28 : vector<8x4x32xf32> to vector<8x128xf32>
    %30 = arith.truncf %29 : vector<8x128xf32> to vector<8x128xbf16>
    %c0_10 = arith.constant 0 : index
    %c0_11 = arith.constant 0 : index
    %31 = vector.load %arg5[%c0_10, %c0_11] : memref<128x128xbf16, #tpu.memory_space<vmem>>, vector<128x128xbf16>
    %cst_12 = arith.constant dense<0.000000e+00> : vector<8x128xf32>
    %32 = tpu.matmul %30, %31, %cst_12 {dimension_numbers = #tpu.dot_dimension_numbers<[1], [0], [0], [1], [0, 0, 1, 1], [], []>} : vector<8x128xbf16>, vector<128x128xbf16>, vector<8x128xf32> -> vector<8x128xf32>
    %c0_13 = arith.constant 0 : index
    %c0_14 = arith.constant 0 : index
    %33 = vector.load %arg6[%c0_13, %c0_14] : memref<1x128xf32, #tpu.memory_space<vmem>>, vector<1x128xf32>
    %34 = vector.broadcast %33 : vector<1x128xf32> to vector<8x128xf32>
    %35 = arith.addf %32, %34 : vector<8x128xf32>
    %c0_15 = arith.constant 0 : index
    %c0_16 = arith.constant 0 : index
    %c0_17 = arith.constant 0 : index
    %36 = vector.load %arg7[%c0_15, %c0_16, %c0_17] : memref<1x8x128xf32, #tpu.memory_space<vmem>>, vector<1x8x128xf32>
    %37 = vector.shape_cast %36 : vector<1x8x128xf32> to vector<8x128xf32>
    %38 = vector.shape_cast %35 : vector<8x128xf32> to vector<1x8x128xf32>
    tpu.vector_store %arg7[%c0_15, %c0_16, %c0_17], %38 {strides = array<i32>} : memref<1x8x128xf32, #tpu.memory_space<vmem>>, vector<1x8x128xf32>,
    return
  }
  func.func @transform_0(%arg0: i32, %arg1: i32) -> (i32, i32, i32) {
    %c0_i32 = arith.constant 0 : i32
    %c0_i32_0 = arith.constant 0 : i32
    return %arg0, %c0_i32, %arg1 : i32, i32, i32
  }
  func.func @transform_1(%arg0: i32, %arg1: i32) -> (i32, i32) {
    %c0_i32 = arith.constant 0 : i32
    %c0_i32_0 = arith.constant 0 : i32
    %c0_i32_1 = arith.constant 0 : i32
    return %c0_i32, %c0_i32_0 : i32, i32
  }
  func.func @transform_2(%arg0: i32, %arg1: i32) -> (i32, i32) {
    %c0_i32 = arith.constant 0 : i32
    %c0_i32_0 = arith.constant 0 : i32
    %c0_i32_1 = arith.constant 0 : i32
    return %c0_i32, %c0_i32_0 : i32, i32
  }
  func.func @transform_3(%arg0: i32, %arg1: i32) -> (i32, i32) {
    %c0_i32 = arith.constant 0 : i32
    %c0_i32_0 = arith.constant 0 : i32
    %c0_i32_1 = arith.constant 0 : i32
    return %c0_i32, %c0_i32_0 : i32, i32
  }
  func.func @transform_4(%arg0: i32, %arg1: i32) -> (i32, i32) {
    %c0_i32 = arith.constant 0 : i32
    %c0_i32_0 = arith.constant 0 : i32
    %c0_i32_1 = arith.constant 0 : i32
    return %c0_i32, %c0_i32_0 : i32, i32
  }
  func.func @transform_5(%arg0: i32, %arg1: i32) -> (i32, i32, i32) {
    %c0_i32 = arith.constant 0 : i32
    %c0_i32_0 = arith.constant 0 : i32
    return %arg0, %c0_i32, %arg1 : i32, i32, i32
  }
}

</mosaic_0001>

<llo_original>
// kernel: sparse_mhat_forward.1
$region0: #{sparse_mhat_forward.1}
  #allocation0 [shape = 'u32[]', space=smem, size = 0x4, offset = 0x4, fixed_abs, tag = 'smem constant byte address 0x4 - core index']
  #allocation1 [shape = 'u32[144,128]{1,0:T(1,128)}', space=vmem, size = 0x12000, scoped, tag = 'internal scratch']
  %s0 = inlined_call_operand.vmem [shape: f32[2,8,512], index: 0, kind: input, shape index: {}]
  %s1 = inlined_call_operand.hbm [shape: bf16[128,384], index: 1, kind: input, shape index: {}]
  %s2 = inlined_call_operand.vmem [shape: f32[1,384], index: 2, kind: input, shape index: {}]
  %s3 = inlined_call_operand.vmem [shape: bf16[128,128], index: 3, kind: input, shape index: {}]
  %s4 = inlined_call_operand.vmem [shape: f32[1,128], index: 4, kind: input, shape index: {}]
  %s5 = inlined_call_operand.vmem [shape: f32[2,8,512], index: 5, kind: output, shape index: {}]
  %s6 = sld [smem:[#allocation0]]
  $region57: #{sparse_mhat_forward.1} parent=0
    _
  %s8 = ssub.s32 1, %s6
  %s9 = scalar_select 0, %s8, %s6
  $region1: #{sparse_mhat_forward.1} parent=0
    #allocation2 [shape = 'u8[98304]{0}', space=vmem, size = 0x18000, scoped, tag = 'input window, operand 1, single buffered']
    #allocation3 [shape = 's32[2]{0}', space=sflag, size = 0x8, scoped, tag = 'scoped memory for sparse_mhat_forward.1']
    %10 = vsyncpa [#allocation3], 0
    loop: start=0, step=1, limit=10
    $region2: #{sparse_mhat_forward.1} parent=1 // loop_pre_header
      _
    $region3: #{sparse_mhat_forward.1} parent=1 // loop_header
      %s12 = sphi 0, %s16
      %p13 = scmp.ge.s32.totalorder %s12, 10
      %s19 = sphi 0, %s31
      %s20 = sphi 0, %s27
      %s21 = sphi 0, %s19
      %s22 = sphi 0, %s20
      %s23 = sphi 0, %s21
      %s24 = sphi 0, %s22
      %s36 = sphi 0, %s38
      %s39 = sphi 0, %s36
      %s40 = sphi 0, %s39
      %s56 = sphi 0, %s40
      %s60 = sphi 0, %s60
      %s62 = sphi 0, %s60
      %s63 = sphi 0, %s62
      %s77 = sphi 0, %s63
      %s81 = sphi 0, %s81
      %s83 = sphi 0, %s81
      %s84 = sphi 0, %s83
      %s98 = sphi 0, %s84
      %s102 = sphi 0, %s102
      %s104 = sphi 0, %s102
      %s105 = sphi 0, %s104
      %s119 = sphi 0, %s105
      %s123 = sphi 0, %s123
      %s125 = sphi 0, %s123
      %s126 = sphi 0, %s125
      %s140 = sphi 0, %s126
      %s148 = sphi 0, %s150
      %s151 = sphi 0, %s148
      %s152 = sphi 0, %s151
      %s168 = sphi 0, %s152
    $region4: #{sparse_mhat_forward.1} parent=1 // loop_header_branch
      %15 = sbr.rel (%p13) target = $region8
    $region5: #{sparse_mhat_forward.1} parent=1 // loop_body
      %s17 = ssub.s32 %s12, 1
      %s18 = ssub.s32 %s12, 2
      %s25 = sadd.s32 1, %s20
      %p26 = scmp.ge.s32.totalorder %s25, 4
      %s27 = scalar_select %p26, 0, %s25
      %s28 = sadd.s32 1, %s19
      %s29 = scalar_select %p26, %s28, %s19
      %p30 = scmp.ge.s32.totalorder %s29, 2
      %s31 = scalar_select %p30, 0, %s29
      %s32 = ssub.s32 %s19, %s31
      %s33 = ssub.s32 %s20, %s27
      %s34 = sor.u32 %s32, %s33
      %p35 = scmp.eq.s32.totalorder %s34, 0
      %s37 = sadd.s32 %s36, 1
      %s38 = scalar_select %p35, %s36, %s37
      %p41 = pneg %p35
      %p42 = scmp.eq.s32.totalorder %s12, 7
      %p43 = por %p41, %p42
      %p44 = scmp.ne.s32.totalorder %s36, %s39
      %p45 = scmp.eq.s32.totalorder %s12, 0
      %p46 = por %p44, %p45
      %p47 = scmp.ne.s32.totalorder %s36, %s39
      %p48 = scmp.eq.s32.totalorder %s17, 7
      %p49 = por %p47, %p48
      %p50 = scmp.ne.s32.totalorder %s39, %s40
      %p51 = scmp.eq.s32.totalorder %s17, 0
      %p52 = por %p50, %p51
      %p53 = scmp.ne.s32.totalorder %s39, %s40
      %p54 = scmp.eq.s32.totalorder %s18, 7
      %p55 = por %p53, %p54
      %p57 = scmp.ne.s32.totalorder %s40, %s56
      %p58 = scmp.eq.s32.totalorder %s18, 0
      %p59 = por %p57, %p58
      %s61 = sadd.s32 %s60, 1
      %p64 = scmp.eq.s32.totalorder %s12, 7
      %p65 = scmp.ne.s32.totalorder %s60, %s62
      %p66 = scmp.eq.s32.totalorder %s12, 0
      %p67 = por %p65, %p66
      %p68 = scmp.ne.s32.totalorder %s60, %s62
      %p69 = scmp.eq.s32.totalorder %s17, 7
      %p70 = por %p68, %p69
      %p71 = scmp.ne.s32.totalorder %s62, %s63
      %p72 = scmp.eq.s32.totalorder %s17, 0
      %p73 = por %p71, %p72
      %p74 = scmp.ne.s32.totalorder %s62, %s63
      %p75 = scmp.eq.s32.totalorder %s18, 7
      %p76 = por %p74, %p75
      %p78 = scmp.ne.s32.totalorder %s63, %s77
      %p79 = scmp.eq.s32.totalorder %s18, 0
      %p80 = por %p78, %p79
      %s82 = sadd.s32 %s81, 1
      %p85 = scmp.eq.s32.totalorder %s12, 7
      %p86 = scmp.ne.s32.totalorder %s81, %s83
      %p87 = scmp.eq.s32.totalorder %s12, 0
      %p88 = por %p86, %p87
      %p89 = scmp.ne.s32.totalorder %s81, %s83
      %p90 = scmp.eq.s32.totalorder %s17, 7
      %p91 = por %p89, %p90
      %p92 = scmp.ne.s32.totalorder %s83, %s84
      %p93 = scmp.eq.s32.totalorder %s17, 0
      %p94 = por %p92, %p93
      %p95 = scmp.ne.s32.totalorder %s83, %s84
      %p96 = scmp.eq.s32.totalorder %s18, 7
      %p97 = por %p95, %p96
      %p99 = scmp.ne.s32.totalorder %s84, %s98
      %p100 = scmp.eq.s32.totalorder %s18, 0
      %p101 = por %p99, %p100
      %s103 = sadd.s32 %s102, 1
      %p106 = scmp.eq.s32.totalorder %s12, 7
      %p107 = scmp.ne.s32.totalorder %s102, %s104
      %p108 = scmp.eq.s32.totalorder %s12, 0
      %p109 = por %p107, %p108
      %p110 = scmp.ne.s32.totalorder %s102, %s104
      %p111 = scmp.eq.s32.totalorder %s17, 7
      %p112 = por %p110, %p111
      %p113 = scmp.ne.s32.totalorder %s104, %s105
      %p114 = scmp.eq.s32.totalorder %s17, 0
      %p115 = por %p113, %p114
      %p116 = scmp.ne.s32.totalorder %s104, %s105
      %p117 = scmp.eq.s32.totalorder %s18, 7
      %p118 = por %p116, %p117
      %p120 = scmp.ne.s32.totalorder %s105, %s119
      %p121 = scmp.eq.s32.totalorder %s18, 0
      %p122 = por %p120, %p121
      %s124 = sadd.s32 %s123, 1
      %p127 = scmp.eq.s32.totalorder %s12, 7
      %p128 = scmp.ne.s32.totalorder %s123, %s125
      %p129 = scmp.eq.s32.totalorder %s12, 0
      %p130 = por %p128, %p129
      %p131 = scmp.ne.s32.totalorder %s123, %s125
      %p132 = scmp.eq.s32.totalorder %s17, 7
      %p133 = por %p131, %p132
      %p134 = scmp.ne.s32.totalorder %s125, %s126
      %p135 = scmp.eq.s32.totalorder %s17, 0
      %p136 = por %p134, %p135
      %p137 = scmp.ne.s32.totalorder %s125, %s126
      %p138 = scmp.eq.s32.totalorder %s18, 7
      %p139 = por %p137, %p138
      %p141 = scmp.ne.s32.totalorder %s126, %s140
      %p142 = scmp.eq.s32.totalorder %s18, 0
      %p143 = por %p141, %p142
      %s144 = ssub.s32 %s19, %s31
      %s145 = ssub.s32 %s20, %s27
      %s146 = sor.u32 %s144, %s145
      %p147 = scmp.eq.s32.totalorder %s146, 0
      %s149 = sadd.s32 %s148, 1
      %s150 = scalar_select %p147, %s148, %s149
      %p153 = pneg %p147
      %p154 = scmp.eq.s32.totalorder %s12, 7
      %p155 = por %p153, %p154
      %p156 = scmp.ne.s32.totalorder %s148, %s151
      %p157 = scmp.eq.s32.totalorder %s12, 0
      %p158 = por %p156, %p157
      %p159 = scmp.ne.s32.totalorder %s148, %s151
      %p160 = scmp.eq.s32.totalorder %s17, 7
      %p161 = por %p159, %p160
      %p162 = scmp.ne.s32.totalorder %s151, %s152
      %p163 = scmp.eq.s32.totalorder %s17, 0
      %p164 = por %p162, %p163
      %p165 = scmp.ne.s32.totalorder %s151, %s152
      %p166 = scmp.eq.s32.totalorder %s18, 7
      %p167 = por %p165, %p166
      %p169 = scmp.ne.s32.totalorder %s152, %s168
      %p170 = scmp.eq.s32.totalorder %s18, 0
      %p171 = por %p169, %p170
      %p172 = scmp.le.s32.totalorder 1, %s12
      %p173 = scmp.lt.s32.totalorder %s12, 9
      %p174 = pnand %p172, %p173
      %p175 = pneg %p174
      // Predicated region
      $region9: #{sparse_mhat_forward.1} parent=5 // pred_check
        _
      $region10: #{sparse_mhat_forward.1} parent=5 // pred_check_branch
        %177 = sbr.rel (%p174) target = $region12
      $region11: #{sparse_mhat_forward.1} parent=5 // pred_region
        %s178 = ssub.s32 %s12, 1
        // Predicated region
        $region13: #{sparse_mhat_forward.1} parent=11 // pred_check
          %p179 = pneg %p73
        $region14: #{sparse_mhat_forward.1} parent=11 // pred_check_branch
          %181 = sbr.rel (%p179) target = $region16
        $region15: #{sparse_mhat_forward.1} parent=11 // pred_region
          %s183 = ssub.s32 3072, 3072
          %184 = vsyncadd [#allocation3], %s183
          %s185 = sshll.u32 [#allocation2], 4
          %s186 = int_to_ptr.vmem [resolvable:$true] %s185
          %191 = dma.hbm_to_vmem [thread:$0]  %s1, 3072, %s186, [#allocation3], 192, 192, 12
        $region16: #{sparse_mhat_forward.1} parent=11 // pred_fallthru
          _
        // Predicated region
        $region17: #{sparse_mhat_forward.1} parent=11 // pred_check
          %p192 = pneg %p94
        $region18: #{sparse_mhat_forward.1} parent=11 // pred_check_branch
          %194 = sbr.rel (%p192) target = $region20
        $region19: #{sparse_mhat_forward.1} parent=11 // pred_region
          _
        $region20: #{sparse_mhat_forward.1} parent=11 // pred_fallthru
          _
        // Predicated region
        $region21: #{sparse_mhat_forward.1} parent=11 // pred_check
          %p195 = pneg %p115
        $region22: #{sparse_mhat_forward.1} parent=11 // pred_check_branch
          %197 = sbr.rel (%p195) target = $region24
        $region23: #{sparse_mhat_forward.1} parent=11 // pred_region
          _
        $region24: #{sparse_mhat_forward.1} parent=11 // pred_fallthru
          _
        // Predicated region
        $region25: #{sparse_mhat_forward.1} parent=11 // pred_check
          %p198 = pneg %p136
        $region26: #{sparse_mhat_forward.1} parent=11 // pred_check_branch
          %200 = sbr.rel (%p198) target = $region28
        $region27: #{sparse_mhat_forward.1} parent=11 // pred_region
          _
        $region28: #{sparse_mhat_forward.1} parent=11 // pred_fallthru
          _
      $region12: #{sparse_mhat_forward.1} parent=5 // pred_fallthru
        _
      %p201 = scmp.lt.s32.totalorder %s12, 8
      // Predicated region
      $region29: #{sparse_mhat_forward.1} parent=5 // pred_check
        %p202 = pneg %p201
      $region30: #{sparse_mhat_forward.1} parent=5 // pred_check_branch
        %204 = sbr.rel (%p202) target = $region32
      $region31: #{sparse_mhat_forward.1} parent=5 // pred_region
        // Predicated region
        $region33: #{sparse_mhat_forward.1} parent=31 // pred_check
          %p205 = pneg %p46
        $region34: #{sparse_mhat_forward.1} parent=31 // pred_check_branch
          %207 = sbr.rel (%p205) target = $region36
        $region35: #{sparse_mhat_forward.1} parent=31 // pred_region
          %p208 = scmp.lt.s32.totalorder %s19, 1
          %s209 = scalar_select %p208, %s19, 1
          %p210 = scmp.lt.s32.totalorder %s20, 3
          %s211 = scalar_select %p210, %s20, 3
          %s212 = smul.addr %s209, 4
          %s213 = sadd.s32 %s211, %s212
          %s214 = smul.addr %s213, 8
          %s215 = scalar_lea.vmem %s0, %s214
        $region36: #{sparse_mhat_forward.1} parent=31 // pred_fallthru
          _
      $region32: #{sparse_mhat_forward.1} parent=5 // pred_fallthru
        _
      %p216 = scmp.le.s32.totalorder 1, %s12
      %p217 = scmp.lt.s32.totalorder %s12, 9
      %p218 = pnand %p216, %p217
      %p219 = pneg %p218
      // Predicated region
      $region37: #{sparse_mhat_forward.1} parent=5 // pred_check
        _
      $region38: #{sparse_mhat_forward.1} parent=5 // pred_check_branch
        %221 = sbr.rel (%p218) target = $region40
      $region39: #{sparse_mhat_forward.1} parent=5 // pred_region
        %s222 = ssub.s32 %s12, 1
        // Predicated region
        $region41: #{sparse_mhat_forward.1} parent=39 // pred_check
          %p223 = pneg %p73
        $region42: #{sparse_mhat_forward.1} parent=39 // pred_check_branch
          %225 = sbr.rel (%p223) target = $region44
        $region43: #{sparse_mhat_forward.1} parent=39 // pred_region
          %226 = dma.done [#allocation3], 3072
        $region44: #{sparse_mhat_forward.1} parent=39 // pred_fallthru
          _
        %p227 = scmp.lt.s32.totalorder %s21, 1
        %s228 = scalar_select %p227, %s21, 1
        %p229 = scmp.lt.s32.totalorder %s22, 3
        %s230 = scalar_select %p229, %s22, 3
        %s231 = smul.addr %s228, 4
        %s232 = sadd.s32 %s230, %s231
        %s233 = smul.addr %s232, 8
        %s234 = scalar_lea.vmem %s0, %s233
        %p235 = pneg %p52
        %p236 = pneg %p49
        %p237 = pneg %p73
        %p238 = pneg %p70
        %p239 = pneg %p94
        %p240 = pneg %p91
        %p241 = pneg %p115
        %p242 = pneg %p112
        %p243 = pneg %p136
        %p244 = pneg %p133
        %p245 = pneg %p164
        %p246 = pneg %p161
        %p247 = scmp.lt.s32.totalorder %s21, 1
        %s248 = scalar_select %p247, %s21, 1
        %p249 = scmp.lt.s32.totalorder %s22, 3
        %s250 = scalar_select %p249, %s22, 3
        %s251 = smul.addr %s248, 4
        %s252 = sadd.s32 %s250, %s251
        %s253 = smul.addr %s252, 8
        %s254 = scalar_lea.vmem %s5, %s253
        %p255 = scmp.lt.s32.totalorder %s21, 1
        %s256 = scalar_select %p255, %s21, 1
        %p257 = scmp.lt.s32.totalorder %s22, 3
        %s258 = scalar_select %p257, %s22, 3
        %s259 = smul.addr %s256, 4
        %s260 = sadd.s32 %s258, %s259
        %s261 = smul.addr %s260, 8
        %s262 = scalar_lea.vmem %s0, %s261
        %p263 = scmp.lt.s32.totalorder %s21, 1
        %s264 = scalar_select %p263, %s21, 1
        %p265 = scmp.lt.s32.totalorder %s22, 3
        %s266 = scalar_select %p265, %s22, 3
        %s267 = smul.addr %s264, 4
        %s268 = sadd.s32 %s266, %s267
        %s269 = smul.addr %s268, 8
        %s270 = scalar_lea.vmem %s5, %s269
        %v272 = vld [vmem:[%s262] sm:$0xff]
        %v273 = vpack.c.bf16 %v272, %v272
        %v274 = vld [vmem:[#allocation2] sm:$0xff]
        %v275 = vld [vmem:[#allocation2 + $0x8] sm:$0xf]
        %v276 = vld [vmem:[#allocation2 + $0xc] sm:$0xff]
        %v277 = vld [vmem:[#allocation2 + $0x14] sm:$0xf]
        %v278 = vld [vmem:[#allocation2 + $0x18] sm:$0xff]
        %v279 = vld [vmem:[#allocation2 + $0x20] sm:$0xf]
        %v280 = vld [vmem:[#allocation2 + $0x24] sm:$0xff]
        %v281 = vld [vmem:[#allocation2 + $0x2c] sm:$0xf]
        %v282 = vld [vmem:[#allocation2 + $0x30] sm:$0xff]
        %v283 = vld [vmem:[#allocation2 + $0x38] sm:$0xf]
        %v284 = vld [vmem:[#allocation2 + $0x3c] sm:$0xff]
        %v285 = vld [vmem:[#allocation2 + $0x44] sm:$0xf]
        %v286 = vld [vmem:[#allocation2 + $0x48] sm:$0xff]
        %v287 = vld [vmem:[#allocation2 + $0x50] sm:$0xf]
        %v288 = vld [vmem:[#allocation2 + $0x54] sm:$0xff]
        %v289 = vld [vmem:[#allocation2 + $0x5c] sm:$0xf]
        %v290 = vld [vmem:[#allocation2 + $0x60] sm:$0xff]
        %v291 = vld [vmem:[#allocation2 + $0x68] sm:$0xf]
        %v292 = vld [vmem:[#allocation2 + $0x6c] sm:$0xff]
        %v293 = vld [vmem:[#allocation2 + $0x74] sm:$0xf]
        %v294 = vld [vmem:[#allocation2 + $0x78] sm:$0xff]
        %v295 = vld [vmem:[#allocation2 + $0x80] sm:$0xf]
        %v296 = vld [vmem:[#allocation2 + $0x84] sm:$0xff]
        %v297 = vld [vmem:[#allocation2 + $0x8c] sm:$0xf]
        %v298 = vld [vmem:[#allocation2 + $0x90] sm:$0xff]
        %v299 = vld [vmem:[#allocation2 + $0x98] sm:$0xf]
        %v300 = vld [vmem:[#allocation2 + $0x9c] sm:$0xff]
        %v301 = vld [vmem:[#allocation2 + $0xa4] sm:$0xf]
        %v302 = vld [vmem:[#allocation2 + $0xa8] sm:$0xff]
        %v303 = vld [vmem:[#allocation2 + $0xb0] sm:$0xf]
        %v304 = vld [vmem:[#allocation2 + $0xb4] sm:$0xff]
        %v305 = vld [vmem:[#allocation2 + $0xbc] sm:$0xf]
        %v306 = vld [vmem:[%s2] sm:$0x7]
        %v308 = vlaneseq
        %v309 = vshrl.u32 %v308, 7
        %v310 = vsub.s32 0, %v309
        %v311 = vrot.slane %v306, %v310
        %v312 = vlaneseq
        %v313 = vshrl.u32 %v312, 7
        %v314 = vsub.s32 1, %v313
        %v315 = vrot.slane %v306, %v314
        %v316 = vlaneseq
        %v317 = vshrl.u32 %v316, 7
        %v318 = vsub.s32 2, %v317
        %v319 = vrot.slane %v306, %v318
        %v355 = vunpack.c.l.b16 %v274
        %v356 = vunpack.c.h.b16 %v274
        %v357 = vunpack.c.l.b16 %v275
        %v358 = vunpack.c.l.b16 %v276
        %v359 = vunpack.c.h.b16 %v276
        %v360 = vunpack.c.l.b16 %v277
        %v361 = vunpack.c.l.b16 %v278
        %v362 = vunpack.c.h.b16 %v278
        %v363 = vunpack.c.l.b16 %v279
        %v364 = vunpack.c.l.b16 %v280
        %v365 = vunpack.c.h.b16 %v280
        %v366 = vunpack.c.l.b16 %v281
        %v367 = vunpack.c.l.b16 %v282
        %v368 = vunpack.c.h.b16 %v282
        %v369 = vunpack.c.l.b16 %v283
        %v370 = vunpack.c.l.b16 %v284
        %v371 = vunpack.c.h.b16 %v284
        %v372 = vunpack.c.l.b16 %v285
        %v373 = vunpack.c.l.b16 %v286
        %v374 = vunpack.c.h.b16 %v286
        %v375 = vunpack.c.l.b16 %v287
        %v376 = vunpack.c.l.b16 %v288
        %v377 = vunpack.c.h.b16 %v288
        %v378 = vunpack.c.l.b16 %v289
        %v379 = vunpack.c.l.b16 %v290
        %v380 = vunpack.c.h.b16 %v290
        %v381 = vunpack.c.l.b16 %v291
        %v382 = vunpack.c.l.b16 %v292
        %v383 = vunpack.c.h.b16 %v292
        %v384 = vunpack.c.l.b16 %v293
        %v385 = vunpack.c.l.b16 %v294
        %v386 = vunpack.c.h.b16 %v294
        %v387 = vunpack.c.l.b16 %v295
        %v388 = vunpack.c.l.b16 %v296
        %v389 = vunpack.c.h.b16 %v296
        %v390 = vunpack.c.l.b16 %v297
        %v391 = vunpack.c.l.b16 %v298
        %v392 = vunpack.c.h.b16 %v298
        %v393 = vunpack.c.l.b16 %v299
        %v394 = vunpack.c.l.b16 %v300
        %v395 = vunpack.c.h.b16 %v300
        %v396 = vunpack.c.l.b16 %v301
        %v397 = vunpack.c.l.b16 %v302
        %v398 = vunpack.c.h.b16 %v302
        %v399 = vunpack.c.l.b16 %v303
        %v400 = vunpack.c.l.b16 %v304
        %v401 = vunpack.c.h.b16 %v304
        %v402 = vunpack.c.l.b16 %v305
        %v403 = vpack.c.b16 %v358, %v355
        %v404 = vpack.c.b16 %v359, %v356
        %v405 = vpack.c.b16 %v360, %v357
        %v406 = vpack.c.b16 %v364, %v361
        %v407 = vpack.c.b16 %v365, %v362
        %v408 = vpack.c.b16 %v366, %v363
        %v409 = vpack.c.b16 %v370, %v367
        %v410 = vpack.c.b16 %v371, %v368
        %v411 = vpack.c.b16 %v372, %v369
        %v412 = vpack.c.b16 %v376, %v373
        %v413 = vpack.c.b16 %v377, %v374
        %v414 = vpack.c.b16 %v378, %v375
        %v415 = vpack.c.b16 %v382, %v379
        %v416 = vpack.c.b16 %v383, %v380
        %v417 = vpack.c.b16 %v384, %v381
        %v418 = vpack.c.b16 %v388, %v385
        %v419 = vpack.c.b16 %v389, %v386
        %v420 = vpack.c.b16 %v390, %v387
        %v421 = vpack.c.b16 %v394, %v391
        %v422 = vpack.c.b16 %v395, %v392
        %v423 = vpack.c.b16 %v396, %v393
        %v424 = vpack.c.b16 %v400, %v397
        %v425 = vpack.c.b16 %v401, %v398
        %v426 = vpack.c.b16 %v402, %v399
        %451 = vmatprep.subr.bf16.mxu0 %v425
        %452 = vmatpush1.bf16.msra.mxu0 %v424
        %453 = vmatprep.subr.bf16.mxu0 %v422
        %454 = vmatpush1.bf16.msra.mxu0 %v421
        %455 = vmatprep.subr.bf16.mxu0 %v419
        %456 = vmatpush1.bf16.msra.mxu0 %v418
        %457 = vmatprep.subr.bf16.mxu0 %v416
        %458 = vmatpush1.bf16.msra.mxu0 %v415
        %459 = vmatprep.subr.bf16.mxu0 %v413
        %460 = vmatpush1.bf16.msra.mxu0 %v412
        %461 = vmatprep.subr.bf16.mxu0 %v410
        %462 = vmatpush1.bf16.msra.mxu0 %v409
        %463 = vmatprep.subr.bf16.mxu0 %v407
        %464 = vmatpush1.bf16.msra.mxu0 %v406
        %465 = vmatprep.subr.bf16.mxu0 %v404
        %466 = vmatpush1.bf16.msra.mxu0 %v403
        %467 = vmatprep.subr.bf16.mxu0 0
        %468 = vmatpush2.bf16.msra.mxu0 0
        %469 = vmatprep.subr.bf16.mxu0 0
        %470 = vmatpush2.bf16.msra.mxu0 0
        %471 = vmatprep.subr.bf16.mxu0 0
        %472 = vmatpush2.bf16.msra.mxu0 0
        %473 = vmatprep.subr.bf16.mxu0 0
        %474 = vmatpush2.bf16.msra.mxu0 0
        %475 = vmatprep.subr.bf16.mxu0 0
        %476 = vmatpush2.bf16.msra.mxu0 0
        %477 = vmatprep.subr.bf16.mxu0 0
        %478 = vmatpush2.bf16.msra.mxu0 0
        %479 = vmatprep.subr.bf16.mxu0 0
        %480 = vmatpush2.bf16.msra.mxu0 0
        %481 = vmatprep.subr.bf16.mxu0 0
        %482 = vmatpush2.bf16.msra.mxu0 0
        %483 = vmatprep.mubr.bf16.mxu0 0
        %484 = vmatmul.mubr.bf16.gmra.mxu0 %v273
        %v485 = vpop.f32.mrf.mxu0
        %v486 = vadd.f32 %v311, %v485
        %v487 = vpop.f32.mrf.mxu0
        %v488 = vadd.f32 %v315, %v487
        %v489 = vpop.f32.mrf.mxu0
        %v490 = vpop.f32.mrf.mxu0
        %491 = vdwg.mxu0
        %492 = vmatprep.subr.bf16.mxu0 0
        %493 = vmatpush1.bf16.msra.mxu0 %v426
        %494 = vmatprep.subr.bf16.mxu0 0
        %495 = vmatpush1.bf16.msra.mxu0 %v423
        %496 = vmatprep.subr.bf16.mxu0 0
        %497 = vmatpush1.bf16.msra.mxu0 %v420
        %498 = vmatprep.subr.bf16.mxu0 0
        %499 = vmatpush1.bf16.msra.mxu0 %v417
        %500 = vmatprep.subr.bf16.mxu0 0
        %501 = vmatpush1.bf16.msra.mxu0 %v414
        %502 = vmatprep.subr.bf16.mxu0 0
        %503 = vmatpush1.bf16.msra.mxu0 %v411
        %504 = vmatprep.subr.bf16.mxu0 0
        %505 = vmatpush1.bf16.msra.mxu0 %v408
        %506 = vmatprep.subr.bf16.mxu0 0
        %507 = vmatpush1.bf16.msra.mxu0 %v405
        %508 = vmatprep.subr.bf16.mxu0 0
        %509 = vmatpush2.bf16.msra.mxu0 0
        %510 = vmatprep.subr.bf16.mxu0 0
        %511 = vmatpush2.bf16.msra.mxu0 0
        %512 = vmatprep.subr.bf16.mxu0 0
        %513 = vmatpush2.bf16.msra.mxu0 0
        %514 = vmatprep.subr.bf16.mxu0 0
        %515 = vmatpush2.bf16.msra.mxu0 0
        %516 = vmatprep.subr.bf16.mxu0 0
        %517 = vmatpush2.bf16.msra.mxu0 0
        %518 = vmatprep.subr.bf16.mxu0 0
        %519 = vmatpush2.bf16.msra.mxu0 0
        %520 = vmatprep.subr.bf16.mxu0 0
        %521 = vmatpush2.bf16.msra.mxu0 0
        %522 = vmatprep.subr.bf16.mxu0 0
        %523 = vmatpush2.bf16.msra.mxu0 0
        %524 = vmatprep.mubr.bf16.mxu0 0
        %525 = vmatmul.mubr.bf16.gmra.mxu0 %v273
        %v526 = vpop.f32.mrf.mxu0
        %v527 = vadd.f32 %v319, %v526
        %v528 = vpop.f32.mrf.mxu0
        %v529 = vpop.f32.mrf.mxu0
        %v530 = vpop.f32.mrf.mxu0
        %531 = vdwg.mxu0
        %v532 = vpack.c.bf16 %v486, %v486
        %v533 = vpack.c.bf16 %v488, %v488
        %v534 = vpack.c.bf16 %v527, %v527
        %536 = vrot.lane.b32.xlu0 %v532, 96
        %v537 = vpop.permute.xlu0 %536
        %538 = vrot.lane.b32.xlu0 %v532, 64
        %v539 = vpop.permute.xlu0 %538
        %540 = vrot.lane.b32.xlu0 %v532, 32
        %v541 = vpop.permute.xlu0 %540
        %543 = vrot.lane.b32.xlu0 %v533, 96
        %v544 = vpop.permute.xlu0 %543
        %546 = vrot.lane.b32.xlu0 %v533, 64
        %v547 = vpop.permute.xlu0 %546
        %549 = vrot.lane.b32.xlu0 %v533, 32
        %v550 = vpop.permute.xlu0 %549
        %553 = vrot.lane.b32.xlu0 %v534, 96
        %v554 = vpop.permute.xlu0 %553
        %556 = vrot.lane.b32.xlu0 %v534, 64
        %v557 = vpop.permute.xlu0 %556
        %559 = vrot.lane.b32.xlu0 %v534, 32
        %v560 = vpop.permute.xlu0 %559
        %562 = vxpose.xlu0.c.b16.start [1/8] %v533, 128
        %563 = vxpose.xlu0.c.b16.cont [2/8] 0, 128
        %564 = vxpose.xlu0.c.b16.cont [3/8] 0, 128
        %565 = vxpose.xlu0.c.b16.cont [4/8] 0, 128
        %566 = vxpose.xlu0.c.b16.cont [5/8] 0, 128
        %567 = vxpose.xlu0.c.b16.cont [6/8] 0, 128
        %568 = vxpose.xlu0.c.b16.cont [7/8] 0, 128
        %569 = vxpose.xlu0.c.b16.end [8/8] 0, 128
        %v570 = vpop.trf.xlu0
        %v571 = vpop.trf.xlu0
        %v572 = vpop.trf.xlu0
        %v573 = vpop.trf.xlu0
        %v574 = vpop.trf.xlu0
        %v575 = vpop.trf.xlu0
        %v576 = vpop.trf.xlu0
        %v577 = vpop.trf.xlu0
        %578 = vxpose.xlu0.c.b16.start [1/8] %v544, 128
        %579 = vxpose.xlu0.c.b16.cont [2/8] 0, 128
        %580 = vxpose.xlu0.c.b16.cont [3/8] 0, 128
        %581 = vxpose.xlu0.c.b16.cont [4/8] 0, 128
        %582 = vxpose.xlu0.c.b16.cont [5/8] 0, 128
        %583 = vxpose.xlu0.c.b16.cont [6/8] 0, 128
        %584 = vxpose.xlu0.c.b16.cont [7/8] 0, 128
        %585 = vxpose.xlu0.c.b16.end [8/8] 0, 128
        %v586 = vpop.trf.xlu0
        %v587 = vpop.trf.xlu0
        %v588 = vpop.trf.xlu0
        %v589 = vpop.trf.xlu0
        %v590 = vpop.trf.xlu0
        %v591 = vpop.trf.xlu0
        %v592 = vpop.trf.xlu0
        %v593 = vpop.trf.xlu0
        %594 = vxpose.xlu0.c.b16.start [1/8] %v547, 128
        %595 = vxpose.xlu0.c.b16.cont [2/8] 0, 128
        %596 = vxpose.xlu0.c.b16.cont [3/8] 0, 128
        %597 = vxpose.xlu0.c.b16.cont [4/8] 0, 128
        %598 = vxpose.xlu0.c.b16.cont [5/8] 0, 128
        %599 = vxpose.xlu0.c.b16.cont [6/8] 0, 128
        %600 = vxpose.xlu0.c.b16.cont [7/8] 0, 128
        %601 = vxpose.xlu0.c.b16.end [8/8] 0, 128
        %v602 = vpop.trf.xlu0
        %v603 = vpop.trf.xlu0
        %v604 = vpop.trf.xlu0
        %v605 = vpop.trf.xlu0
        %v606 = vpop.trf.xlu0
        %v607 = vpop.trf.xlu0
        %v608 = vpop.trf.xlu0
        %v609 = vpop.trf.xlu0
        %610 = vxpose.xlu0.c.b16.start [1/8] %v550, 128
        %611 = vxpose.xlu0.c.b16.cont [2/8] 0, 128
        %612 = vxpose.xlu0.c.b16.cont [3/8] 0, 128
        %613 = vxpose.xlu0.c.b16.cont [4/8] 0, 128
        %614 = vxpose.xlu0.c.b16.cont [5/8] 0, 128
        %615 = vxpose.xlu0.c.b16.cont [6/8] 0, 128
        %616 = vxpose.xlu0.c.b16.cont [7/8] 0, 128
        %617 = vxpose.xlu0.c.b16.end [8/8] 0, 128
        %v618 = vpop.trf.xlu0
        %v619 = vpop.trf.xlu0
        %v620 = vpop.trf.xlu0
        %v621 = vpop.trf.xlu0
        %v622 = vpop.trf.xlu0
        %v623 = vpop.trf.xlu0
        %v624 = vpop.trf.xlu0
        %v625 = vpop.trf.xlu0
        %vm626 = vcmask 261120
        %v628 = vsel %vm626, %v532, 0
        %630 = vmatprep.subr.bf16.mxu0 0
        %631 = vmatpush1.bf16.msra.mxu0 0
        %632 = vmatprep.subr.bf16.mxu0 0
        %633 = vmatpush1.bf16.msra.mxu0 0
        %634 = vmatprep.subr.bf16.mxu0 0
        %635 = vmatpush1.bf16.msra.mxu0 0
        %636 = vmatprep.subr.bf16.mxu0 0
        %637 = vmatpush1.bf16.msra.mxu0 0
        %638 = vmatprep.subr.bf16.mxu0 0
        %639 = vmatpush1.bf16.msra.mxu0 0
        %640 = vmatprep.subr.bf16.mxu0 0
        %641 = vmatpush1.bf16.msra.mxu0 0
        %642 = vmatprep.subr.bf16.mxu0 0
        %643 = vmatpush1.bf16.msra.mxu0 %v571
        %644 = vmatprep.subr.bf16.mxu0 0
        %645 = vmatpush1.bf16.msra.mxu0 %v570
        %646 = vmatprep.subr.bf16.mxu0 0
        %647 = vmatpush2.bf16.msra.mxu0 0
        %648 = vmatprep.subr.bf16.mxu0 0
        %649 = vmatpush2.bf16.msra.mxu0 0
        %650 = vmatprep.subr.bf16.mxu0 0
        %651 = vmatpush2.bf16.msra.mxu0 0
        %652 = vmatprep.subr.bf16.mxu0 0
        %653 = vmatpush2.bf16.msra.mxu0 0
        %654 = vmatprep.subr.bf16.mxu0 0
        %655 = vmatpush2.bf16.msra.mxu0 0
        %656 = vmatprep.subr.bf16.mxu0 0
        %657 = vmatpush2.bf16.msra.mxu0 0
        %658 = vmatprep.subr.bf16.mxu0 0
        %659 = vmatpush2.bf16.msra.mxu0 0
        %660 = vmatprep.subr.bf16.mxu0 0
        %661 = vmatpush2.bf16.msra.mxu0 0
        %662 = vmatprep.mubr.bf16.mxu0 0
        %663 = vmatmul.mubr.bf16.gmra.mxu0 %v628
        %v664 = vpop.f32.mrf.mxu0
        %v665 = vadd.f32 0.0, %v664
        %v666 = vpop.f32.mrf.mxu0
        %v667 = vpop.f32.mrf.mxu0
        %v668 = vpop.f32.mrf.mxu0
        %669 = vdwg.mxu0
        %v671 = vsel %vm626, %v537, 0
        %673 = vmatprep.subr.bf16.mxu0 0
        %674 = vmatpush1.bf16.msra.mxu0 0
        %675 = vmatprep.subr.bf16.mxu0 0
        %676 = vmatpush1.bf16.msra.mxu0 0
        %677 = vmatprep.subr.bf16.mxu0 0
        %678 = vmatpush1.bf16.msra.mxu0 0
        %679 = vmatprep.subr.bf16.mxu0 0
        %680 = vmatpush1.bf16.msra.mxu0 0
        %681 = vmatprep.subr.bf16.mxu0 0
        %682 = vmatpush1.bf16.msra.mxu0 0
        %683 = vmatprep.subr.bf16.mxu0 0
        %684 = vmatpush1.bf16.msra.mxu0 0
        %685 = vmatprep.subr.bf16.mxu0 0
        %686 = vmatpush1.bf16.msra.mxu0 %v587
        %687 = vmatprep.subr.bf16.mxu0 0
        %688 = vmatpush1.bf16.msra.mxu0 %v586
        %689 = vmatprep.subr.bf16.mxu0 0
        %690 = vmatpush2.bf16.msra.mxu0 0
        %691 = vmatprep.subr.bf16.mxu0 0
        %692 = vmatpush2.bf16.msra.mxu0 0
        %693 = vmatprep.subr.bf16.mxu0 0
        %694 = vmatpush2.bf16.msra.mxu0 0
        %695 = vmatprep.subr.bf16.mxu0 0
        %696 = vmatpush2.bf16.msra.mxu0 0
        %697 = vmatprep.subr.bf16.mxu0 0
        %698 = vmatpush2.bf16.msra.mxu0 0
        %699 = vmatprep.subr.bf16.mxu0 0
        %700 = vmatpush2.bf16.msra.mxu0 0
        %701 = vmatprep.subr.bf16.mxu0 0
        %702 = vmatpush2.bf16.msra.mxu0 0
        %703 = vmatprep.subr.bf16.mxu0 0
        %704 = vmatpush2.bf16.msra.mxu0 0
        %705 = vmatprep.mubr.bf16.mxu0 0
        %706 = vmatmul.mubr.bf16.gmra.mxu0 %v671
        %v707 = vpop.f32.mrf.mxu0
        %v708 = vadd.f32 0.0, %v707
        %v709 = vpop.f32.mrf.mxu0
        %v710 = vpop.f32.mrf.mxu0
        %v711 = vpop.f32.mrf.mxu0
        %712 = vdwg.mxu0
        %v714 = vsel %vm626, %v539, 0
        %716 = vmatprep.subr.bf16.mxu0 0
        %717 = vmatpush1.bf16.msra.mxu0 0
        %718 = vmatprep.subr.bf16.mxu0 0
        %719 = vmatpush1.bf16.msra.mxu0 0
        %720 = vmatprep.subr.bf16.mxu0 0
        %721 = vmatpush1.bf16.msra.mxu0 0
        %722 = vmatprep.subr.bf16.mxu0 0
        %723 = vmatpush1.bf16.msra.mxu0 0
        %724 = vmatprep.subr.bf16.mxu0 0
        %725 = vmatpush1.bf16.msra.mxu0 0
        %726 = vmatprep.subr.bf16.mxu0 0
        %727 = vmatpush1.bf16.msra.mxu0 0
        %728 = vmatprep.subr.bf16.mxu0 0
        %729 = vmatpush1.bf16.msra.mxu0 %v603
        %730 = vmatprep.subr.bf16.mxu0 0
        %731 = vmatpush1.bf16.msra.mxu0 %v602
        %732 = vmatprep.subr.bf16.mxu0 0
        %733 = vmatpush2.bf16.msra.mxu0 0
        %734 = vmatprep.subr.bf16.mxu0 0
        %735 = vmatpush2.bf16.msra.mxu0 0
        %736 = vmatprep.subr.bf16.mxu0 0
        %737 = vmatpush2.bf16.msra.mxu0 0
        %738 = vmatprep.subr.bf16.mxu0 0
        %739 = vmatpush2.bf16.msra.mxu0 0
        %740 = vmatprep.subr.bf16.mxu0 0
        %741 = vmatpush2.bf16.msra.mxu0 0
        %742 = vmatprep.subr.bf16.mxu0 0
        %743 = vmatpush2.bf16.msra.mxu0 0
        %744 = vmatprep.subr.bf16.mxu0 0
        %745 = vmatpush2.bf16.msra.mxu0 0
        %746 = vmatprep.subr.bf16.mxu0 0
        %747 = vmatpush2.bf16.msra.mxu0 0
        %748 = vmatprep.mubr.bf16.mxu0 0
        %749 = vmatmul.mubr.bf16.gmra.mxu0 %v714
        %v750 = vpop.f32.mrf.mxu0
        %v751 = vadd.f32 0.0, %v750
        %v752 = vpop.f32.mrf.mxu0
        %v753 = vpop.f32.mrf.mxu0
        %v754 = vpop.f32.mrf.mxu0
        %755 = vdwg.mxu0
        %v757 = vsel %vm626, %v541, 0
        %759 = vmatprep.subr.bf16.mxu0 0
        %760 = vmatpush1.bf16.msra.mxu0 0
        %761 = vmatprep.subr.bf16.mxu0 0
        %762 = vmatpush1.bf16.msra.mxu0 0
        %763 = vmatprep.subr.bf16.mxu0 0
        %764 = vmatpush1.bf16.msra.mxu0 0
        %765 = vmatprep.subr.bf16.mxu0 0
        %766 = vmatpush1.bf16.msra.mxu0 0
        %767 = vmatprep.subr.bf16.mxu0 0
        %768 = vmatpush1.bf16.msra.mxu0 0
        %769 = vmatprep.subr.bf16.mxu0 0
        %770 = vmatpush1.bf16.msra.mxu0 0
        %771 = vmatprep.subr.bf16.mxu0 0
        %772 = vmatpush1.bf16.msra.mxu0 %v619
        %773 = vmatprep.subr.bf16.mxu0 0
        %774 = vmatpush1.bf16.msra.mxu0 %v618
        %775 = vmatprep.subr.bf16.mxu0 0
        %776 = vmatpush2.bf16.msra.mxu0 0
        %777 = vmatprep.subr.bf16.mxu0 0
        %778 = vmatpush2.bf16.msra.mxu0 0
        %779 = vmatprep.subr.bf16.mxu0 0
        %780 = vmatpush2.bf16.msra.mxu0 0
        %781 = vmatprep.subr.bf16.mxu0 0
        %782 = vmatpush2.bf16.msra.mxu0 0
        %783 = vmatprep.subr.bf16.mxu0 0
        %784 = vmatpush2.bf16.msra.mxu0 0
        %785 = vmatprep.subr.bf16.mxu0 0
        %786 = vmatpush2.bf16.msra.mxu0 0
        %787 = vmatprep.subr.bf16.mxu0 0
        %788 = vmatpush2.bf16.msra.mxu0 0
        %789 = vmatprep.subr.bf16.mxu0 0
        %790 = vmatpush2.bf16.msra.mxu0 0
        %791 = vmatprep.mubr.bf16.mxu0 0
        %792 = vmatmul.mubr.bf16.gmra.mxu0 %v757
        %v793 = vpop.f32.mrf.mxu0
        %v794 = vadd.f32 0.0, %v793
        %v795 = vpop.f32.mrf.mxu0
        %v796 = vpop.f32.mrf.mxu0
        %v797 = vpop.f32.mrf.mxu0
        %798 = vdwg.mxu0
        %vm799 = vcmask 64512
        %v800 = vsel %vm799, %v665, -inf
        %801 = vmax.xlane.f32.xlu0 %v800
        %v802 = vpop.xlane.xlu0 %801
        %v803 = vsel %vm799, %v708, -inf
        %804 = vmax.xlane.f32.xlu0 %v803
        %v805 = vpop.xlane.xlu0 %804
        %v806 = vsel %vm799, %v751, -inf
        %807 = vmax.xlane.f32.xlu0 %v806
        %v808 = vpop.xlane.xlu0 %807
        %v809 = vsel %vm799, %v794, -inf
        %810 = vmax.xlane.f32.xlu0 %v809
        %v811 = vpop.xlane.xlu0 %810
        %v812 = vsub.f32 %v665, %v802
        %v813 = vsub.f32 %v708, %v805
        %v814 = vsub.f32 %v751, %v808
        %v815 = vsub.f32 %v794, %v811
        %v816 = vmul.f32 %v812, 1.442695
        %v817 = vpow.pop %v816
        %v818 = vmul.f32 %v813, 1.442695
        %v819 = vpow.pop %v818
        %v820 = vmul.f32 %v814, 1.442695
        %v821 = vpow.pop %v820
        %v822 = vmul.f32 %v815, 1.442695
        %v823 = vpow.pop %v822
        %v824 = vsel %vm799, %v817, 0.0
        %825 = vadd.xlane.f32.xlu0 %v824
        %v826 = vpop.xlane.xlu0 %825
        %v827 = vsel %vm799, %v819, 0.0
        %828 = vadd.xlane.f32.xlu0 %v827
        %v829 = vpop.xlane.xlu0 %828
        %v830 = vsel %vm799, %v821, 0.0
        %831 = vadd.xlane.f32.xlu0 %v830
        %v832 = vpop.xlane.xlu0 %831
        %v833 = vsel %vm799, %v823, 0.0
        %834 = vadd.xlane.f32.xlu0 %v833
        %v835 = vpop.xlane.xlu0 %834
        %v836 = vrcp.pop %v826
        %v837 = vrcp.pop %v829
        %v838 = vrcp.pop %v832
        %v839 = vrcp.pop %v835
        %v840 = vmul.f32 %v817, %v836
        %v841 = vmul.f32 %v819, %v837
        %v842 = vmul.f32 %v821, %v838
        %v843 = vmul.f32 %v823, %v839
        %v844 = vpack.c.bf16 %v840, %v840
        %v845 = vpack.c.bf16 %v841, %v841
        %v846 = vpack.c.bf16 %v842, %v842
        %v847 = vpack.c.bf16 %v843, %v843
        %848 = vxpose.xlu0.c.b16.start [1/8] %v534, 128
        %849 = vxpose.xlu0.c.b16.cont [2/8] 0, 128
        %850 = vxpose.xlu0.c.b16.cont [3/8] 0, 128
        %851 = vxpose.xlu0.c.b16.cont [4/8] 0, 128
        %852 = vxpose.xlu0.c.b16.cont [5/8] 0, 128
        %853 = vxpose.xlu0.c.b16.cont [6/8] 0, 128
        %854 = vxpose.xlu0.c.b16.cont [7/8] 0, 128
        %855 = vxpose.xlu0.c.b16.end [8/8] 0, 128
        %v856 = vpop.trf.xlu0
        %v857 = vpop.trf.xlu0
        %v858 = vpop.trf.xlu0
        %v859 = vpop.trf.xlu0
        %v860 = vpop.trf.xlu0
        %v861 = vpop.trf.xlu0
        %v862 = vpop.trf.xlu0
        %v863 = vpop.trf.xlu0
        %864 = vxpose.xlu0.c.b16.start [1/8] %v554, 128
        %865 = vxpose.xlu0.c.b16.cont [2/8] 0, 128
        %866 = vxpose.xlu0.c.b16.cont [3/8] 0, 128
        %867 = vxpose.xlu0.c.b16.cont [4/8] 0, 128
        %868 = vxpose.xlu0.c.b16.cont [5/8] 0, 128
        %869 = vxpose.xlu0.c.b16.cont [6/8] 0, 128
        %870 = vxpose.xlu0.c.b16.cont [7/8] 0, 128
        %871 = vxpose.xlu0.c.b16.end [8/8] 0, 128
        %v872 = vpop.trf.xlu0
        %v873 = vpop.trf.xlu0
        %v874 = vpop.trf.xlu0
        %v875 = vpop.trf.xlu0
        %v876 = vpop.trf.xlu0
        %v877 = vpop.trf.xlu0
        %v878 = vpop.trf.xlu0
        %v879 = vpop.trf.xlu0
        %880 = vxpose.xlu0.c.b16.start [1/8] %v557, 128
        %881 = vxpose.xlu0.c.b16.cont [2/8] 0, 128
        %882 = vxpose.xlu0.c.b16.cont [3/8] 0, 128
        %883 = vxpose.xlu0.c.b16.cont [4/8] 0, 128
        %884 = vxpose.xlu0.c.b16.cont [5/8] 0, 128
        %885 = vxpose.xlu0.c.b16.cont [6/8] 0, 128
        %886 = vxpose.xlu0.c.b16.cont [7/8] 0, 128
        %887 = vxpose.xlu0.c.b16.end [8/8] 0, 128
        %v888 = vpop.trf.xlu0
        %v889 = vpop.trf.xlu0
        %v890 = vpop.trf.xlu0
        %v891 = vpop.trf.xlu0
        %v892 = vpop.trf.xlu0
        %v893 = vpop.trf.xlu0
        %v894 = vpop.trf.xlu0
        %v895 = vpop.trf.xlu0
        %896 = vxpose.xlu0.c.b16.start [1/8] %v560, 128
        %897 = vxpose.xlu0.c.b16.cont [2/8] 0, 128
        %898 = vxpose.xlu0.c.b16.cont [3/8] 0, 128
        %899 = vxpose.xlu0.c.b16.cont [4/8] 0, 128
        %900 = vxpose.xlu0.c.b16.cont [5/8] 0, 128
        %901 = vxpose.xlu0.c.b16.cont [6/8] 0, 128
        %902 = vxpose.xlu0.c.b16.cont [7/8] 0, 128
        %903 = vxpose.xlu0.c.b16.end [8/8] 0, 128
        %v904 = vpop.trf.xlu0
        %v905 = vpop.trf.xlu0
        %v906 = vpop.trf.xlu0
        %v907 = vpop.trf.xlu0
        %v908 = vpop.trf.xlu0
        %v909 = vpop.trf.xlu0
        %v910 = vpop.trf.xlu0
        %v911 = vpop.trf.xlu0
        %v913 = vsel %vm799, %v856, 0
        %v916 = vsel %vm799, %v857, 0
        %v919 = vsel %vm799, %v844, 0
        %921 = vmatprep.subr.bf16.mxu0 0
        %922 = vmatpush1.bf16.xpose.msra.mxu0 0
        %923 = vmatprep.subr.bf16.mxu0 0
        %924 = vmatpush1.bf16.xpose.msra.mxu0 0
        %925 = vmatprep.subr.bf16.mxu0 0
        %926 = vmatpush1.bf16.xpose.msra.mxu0 0
        %927 = vmatprep.subr.bf16.mxu0 0
        %928 = vmatpush1.bf16.xpose.msra.mxu0 0
        %929 = vmatprep.subr.bf16.mxu0 0
        %930 = vmatpush1.bf16.xpose.msra.mxu0 0
        %931 = vmatprep.subr.bf16.mxu0 0
        %932 = vmatpush1.bf16.xpose.msra.mxu0 0
        %933 = vmatprep.subr.bf16.mxu0 0
        %934 = vmatpush1.bf16.xpose.msra.mxu0 0
        %935 = vmatprep.subr.bf16.mxu0 0
        %936 = vmatpush1.bf16.xpose.msra.mxu0 %v919
        %937 = vmatprep.subr.bf16.mxu0 0
        %938 = vmatpush2.bf16.xpose.msra.mxu0 0
        %939 = vmatprep.subr.bf16.mxu0 0
        %940 = vmatpush2.bf16.xpose.msra.mxu0 0
        %941 = vmatprep.subr.bf16.mxu0 0
        %942 = vmatpush2.bf16.xpose.msra.mxu0 0
        %943 = vmatprep.subr.bf16.mxu0 0
        %944 = vmatpush2.bf16.xpose.msra.mxu0 0
        %945 = vmatprep.subr.bf16.mxu0 0
        %946 = vmatpush2.bf16.xpose.msra.mxu0 0
        %947 = vmatprep.subr.bf16.mxu0 0
        %948 = vmatpush2.bf16.xpose.msra.mxu0 0
        %949 = vmatprep.subr.bf16.mxu0 0
        %950 = vmatpush2.bf16.xpose.msra.mxu0 0
        %951 = vmatprep.subr.bf16.mxu0 0
        %952 = vmatpush2.bf16.xpose.msra.mxu0 0
        %953 = vmatprep.mubr.bf16.mxu0 0
        %954 = vmatmul.mubr.bf16.gmra.mxu0 %v913
        %v955 = vpop.f32.mrf.mxu0
        %v956 = vadd.f32 0.0, %v955
        %v957 = vpop.f32.mrf.mxu0
        %v958 = vpop.f32.mrf.mxu0
        %v959 = vadd.f32 0.0, %v958
        %v960 = vpop.f32.mrf.mxu0
        %961 = vmatprep.mubr.bf16.mxu0 0
        %962 = vmatmul.mubr.bf16.gmra.mxu0 %v916
        %v963 = vpop.f32.mrf.mxu0
        %v964 = vadd.f32 0.0, %v963
        %v965 = vpop.f32.mrf.mxu0
        %v966 = vpop.f32.mrf.mxu0
        %v967 = vadd.f32 0.0, %v966
        %v968 = vpop.f32.mrf.mxu0
        %969 = vdwg.mxu0
        %v971 = vsel %vm799, %v872, 0
        %v974 = vsel %vm799, %v873, 0
        %v977 = vsel %vm799, %v845, 0
        %979 = vmatprep.subr.bf16.mxu0 0
        %980 = vmatpush1.bf16.xpose.msra.mxu0 0
        %981 = vmatprep.subr.bf16.mxu0 0
        %982 = vmatpush1.bf16.xpose.msra.mxu0 0
        %983 = vmatprep.subr.bf16.mxu0 0
        %984 = vmatpush1.bf16.xpose.msra.mxu0 0
        %985 = vmatprep.subr.bf16.mxu0 0
        %986 = vmatpush1.bf16.xpose.msra.mxu0 0
        %987 = vmatprep.subr.bf16.mxu0 0
        %988 = vmatpush1.bf16.xpose.msra.mxu0 0
        %989 = vmatprep.subr.bf16.mxu0 0
        %990 = vmatpush1.bf16.xpose.msra.mxu0 0
        %991 = vmatprep.subr.bf16.mxu0 0
        %992 = vmatpush1.bf16.xpose.msra.mxu0 0
        %993 = vmatprep.subr.bf16.mxu0 0
        %994 = vmatpush1.bf16.xpose.msra.mxu0 %v977
        %995 = vmatprep.subr.bf16.mxu0 0
        %996 = vmatpush2.bf16.xpose.msra.mxu0 0
        %997 = vmatprep.subr.bf16.mxu0 0
        %998 = vmatpush2.bf16.xpose.msra.mxu0 0
        %999 = vmatprep.subr.bf16.mxu0 0
        %1000 = vmatpush2.bf16.xpose.msra.mxu0 0
        %1001 = vmatprep.subr.bf16.mxu0 0
        %1002 = vmatpush2.bf16.xpose.msra.mxu0 0
        %1003 = vmatprep.subr.bf16.mxu0 0
        %1004 = vmatpush2.bf16.xpose.msra.mxu0 0
        %1005 = vmatprep.subr.bf16.mxu0 0
        %1006 = vmatpush2.bf16.xpose.msra.mxu0 0
        %1007 = vmatprep.subr.bf16.mxu0 0
        %1008 = vmatpush2.bf16.xpose.msra.mxu0 0
        %1009 = vmatprep.subr.bf16.mxu0 0
        %1010 = vmatpush2.bf16.xpose.msra.mxu0 0
        %1011 = vmatprep.mubr.bf16.mxu0 0
        %1012 = vmatmul.mubr.bf16.gmra.mxu0 %v971
        %v1013 = vpop.f32.mrf.mxu0
        %v1014 = vadd.f32 0.0, %v1013
        %v1015 = vpop.f32.mrf.mxu0
        %v1016 = vpop.f32.mrf.mxu0
        %v1017 = vadd.f32 0.0, %v1016
        %v1018 = vpop.f32.mrf.mxu0
        %1019 = vmatprep.mubr.bf16.mxu0 0
        %1020 = vmatmul.mubr.bf16.gmra.mxu0 %v974
        %v1021 = vpop.f32.mrf.mxu0
        %v1022 = vadd.f32 0.0, %v1021
        %v1023 = vpop.f32.mrf.mxu0
        %v1024 = vpop.f32.mrf.mxu0
        %v1025 = vadd.f32 0.0, %v1024
        %v1026 = vpop.f32.mrf.mxu0
        %1027 = vdwg.mxu0
        %v1029 = vsel %vm799, %v888, 0
        %v1032 = vsel %vm799, %v889, 0
        %v1035 = vsel %vm799, %v846, 0
        %1037 = vmatprep.subr.bf16.mxu0 0
        %1038 = vmatpush1.bf16.xpose.msra.mxu0 0
        %1039 = vmatprep.subr.bf16.mxu0 0
        %1040 = vmatpush1.bf16.xpose.msra.mxu0 0
        %1041 = vmatprep.subr.bf16.mxu0 0
        %1042 = vmatpush1.bf16.xpose.msra.mxu0 0
        %1043 = vmatprep.subr.bf16.mxu0 0
        %1044 = vmatpush1.bf16.xpose.msra.mxu0 0
        %1045 = vmatprep.subr.bf16.mxu0 0
        %1046 = vmatpush1.bf16.xpose.msra.mxu0 0
        %1047 = vmatprep.subr.bf16.mxu0 0
        %1048 = vmatpush1.bf16.xpose.msra.mxu0 0
        %1049 = vmatprep.subr.bf16.mxu0 0
        %1050 = vmatpush1.bf16.xpose.msra.mxu0 0
        %1051 = vmatprep.subr.bf16.mxu0 0
        %1052 = vmatpush1.bf16.xpose.msra.mxu0 %v1035
        %1053 = vmatprep.subr.bf16.mxu0 0
        %1054 = vmatpush2.bf16.xpose.msra.mxu0 0
        %1055 = vmatprep.subr.bf16.mxu0 0
        %1056 = vmatpush2.bf16.xpose.msra.mxu0 0
        %1057 = vmatprep.subr.bf16.mxu0 0
        %1058 = vmatpush2.bf16.xpose.msra.mxu0 0
        %1059 = vmatprep.subr.bf16.mxu0 0
        %1060 = vmatpush2.bf16.xpose.msra.mxu0 0
        %1061 = vmatprep.subr.bf16.mxu0 0
        %1062 = vmatpush2.bf16.xpose.msra.mxu0 0
        %1063 = vmatprep.subr.bf16.mxu0 0
        %1064 = vmatpush2.bf16.xpose.msra.mxu0 0
        %1065 = vmatprep.subr.bf16.mxu0 0
        %1066 = vmatpush2.bf16.xpose.msra.mxu0 0
        %1067 = vmatprep.subr.bf16.mxu0 0
        %1068 = vmatpush2.bf16.xpose.msra.mxu0 0
        %1069 = vmatprep.mubr.bf16.mxu0 0
        %1070 = vmatmul.mubr.bf16.gmra.mxu0 %v1029
        %v1071 = vpop.f32.mrf.mxu0
        %v1072 = vadd.f32 0.0, %v1071
        %v1073 = vpop.f32.mrf.mxu0
        %v1074 = vpop.f32.mrf.mxu0
        %v1075 = vadd.f32 0.0, %v1074
        %v1076 = vpop.f32.mrf.mxu0
        %1077 = vmatprep.mubr.bf16.mxu0 0
        %1078 = vmatmul.mubr.bf16.gmra.mxu0 %v1032
        %v1079 = vpop.f32.mrf.mxu0
        %v1080 = vadd.f32 0.0, %v1079
        %v1081 = vpop.f32.mrf.mxu0
        %v1082 = vpop.f32.mrf.mxu0
        %v1083 = vadd.f32 0.0, %v1082
        %v1084 = vpop.f32.mrf.mxu0
        %1085 = vdwg.mxu0
        %v1087 = vsel %vm799, %v904, 0
        %v1090 = vsel %vm799, %v905, 0
        %v1093 = vsel %vm799, %v847, 0
        %1095 = vmatprep.subr.bf16.mxu0 0
        %1096 = vmatpush1.bf16.xpose.msra.mxu0 0
        %1097 = vmatprep.subr.bf16.mxu0 0
        %1098 = vmatpush1.bf16.xpose.msra.mxu0 0
        %1099 = vmatprep.subr.bf16.mxu0 0
        %1100 = vmatpush1.bf16.xpose.msra.mxu0 0
        %1101 = vmatprep.subr.bf16.mxu0 0
        %1102 = vmatpush1.bf16.xpose.msra.mxu0 0
        %1103 = vmatprep.subr.bf16.mxu0 0
        %1104 = vmatpush1.bf16.xpose.msra.mxu0 0
        %1105 = vmatprep.subr.bf16.mxu0 0
        %1106 = vmatpush1.bf16.xpose.msra.mxu0 0
        %1107 = vmatprep.subr.bf16.mxu0 0
        %1108 = vmatpush1.bf16.xpose.msra.mxu0 0
        %1109 = vmatprep.subr.bf16.mxu0 0
        %1110 = vmatpush1.bf16.xpose.msra.mxu0 %v1093
        %1111 = vmatprep.subr.bf16.mxu0 0
        %1112 = vmatpush2.bf16.xpose.msra.mxu0 0
        %1113 = vmatprep.subr.bf16.mxu0 0
        %1114 = vmatpush2.bf16.xpose.msra.mxu0 0
        %1115 = vmatprep.subr.bf16.mxu0 0
        %1116 = vmatpush2.bf16.xpose.msra.mxu0 0
        %1117 = vmatprep.subr.bf16.mxu0 0
        %1118 = vmatpush2.bf16.xpose.msra.mxu0 0
        %1119 = vmatprep.subr.bf16.mxu0 0
        %1120 = vmatpush2.bf16.xpose.msra.mxu0 0
        %1121 = vmatprep.subr.bf16.mxu0 0
        %1122 = vmatpush2.bf16.xpose.msra.mxu0 0
        %1123 = vmatprep.subr.bf16.mxu0 0
        %1124 = vmatpush2.bf16.xpose.msra.mxu0 0
        %1125 = vmatprep.subr.bf16.mxu0 0
        %1126 = vmatpush2.bf16.xpose.msra.mxu0 0
        %1127 = vmatprep.mubr.bf16.mxu0 0
        %1128 = vmatmul.mubr.bf16.gmra.mxu0 %v1087
        %v1129 = vpop.f32.mrf.mxu0
        %v1130 = vadd.f32 0.0, %v1129
        %v1131 = vpop.f32.mrf.mxu0
        %v1132 = vpop.f32.mrf.mxu0
        %v1133 = vadd.f32 0.0, %v1132
        %v1134 = vpop.f32.mrf.mxu0
        %1135 = vmatprep.mubr.bf16.mxu0 0
        %1136 = vmatmul.mubr.bf16.gmra.mxu0 %v1090
        %v1137 = vpop.f32.mrf.mxu0
        %v1138 = vadd.f32 0.0, %v1137
        %v1139 = vpop.f32.mrf.mxu0
        %v1140 = vpop.f32.mrf.mxu0
        %v1141 = vadd.f32 0.0, %v1140
        %v1142 = vpop.f32.mrf.mxu0
        %1143 = vdwg.mxu0
        %1144 = vxpose.xlu0.b32.start [1/16] %v956, 128
        %1145 = vxpose.xlu0.b32.cont [2/16] %v959, 128
        %1146 = vxpose.xlu0.b32.cont [3/16] %v964, 128
        %1147 = vxpose.xlu0.b32.cont [4/16] %v967, 128
        %1148 = vxpose.xlu0.b32.cont [5/16] 0.0, 128
        %1149 = vxpose.xlu0.b32.cont [6/16] 0.0, 128
        %1150 = vxpose.xlu0.b32.cont [7/16] 0.0, 128
        %1151 = vxpose.xlu0.b32.cont [8/16] 0.0, 128
        %1152 = vxpose.xlu0.b32.cont [9/16] 0.0, 128
        %1153 = vxpose.xlu0.b32.cont [10/16] 0.0, 128
        %1154 = vxpose.xlu0.b32.cont [11/16] 0.0, 128
        %1155 = vxpose.xlu0.b32.cont [12/16] 0.0, 128
        %1156 = vxpose.xlu0.b32.cont [13/16] 0.0, 128
        %1157 = vxpose.xlu0.b32.cont [14/16] 0.0, 128
        %1158 = vxpose.xlu0.b32.cont [15/16] 0.0, 128
        %1159 = vxpose.xlu0.b32.end [16/16] 0.0, 128
        %v1160 = vpop.trf.xlu0
        %v1161 = vpop.trf.xlu0
        %v1162 = vpop.trf.xlu0
        %v1163 = vpop.trf.xlu0
        %v1164 = vpop.trf.xlu0
        %v1165 = vpop.trf.xlu0
        %v1166 = vpop.trf.xlu0
        %v1167 = vpop.trf.xlu0
        %v1168 = vpop.trf.xlu0
        %v1169 = vpop.trf.xlu0
        %v1170 = vpop.trf.xlu0
        %v1171 = vpop.trf.xlu0
        %v1172 = vpop.trf.xlu0
        %v1173 = vpop.trf.xlu0
        %v1174 = vpop.trf.xlu0
        %v1175 = vpop.trf.xlu0
        %1176 = vxpose.xlu0.b32.start [1/16] %v1014, 128
        %1177 = vxpose.xlu0.b32.cont [2/16] %v1017, 128
        %1178 = vxpose.xlu0.b32.cont [3/16] %v1022, 128
        %1179 = vxpose.xlu0.b32.cont [4/16] %v1025, 128
        %1180 = vxpose.xlu0.b32.cont [5/16] 0.0, 128
        %1181 = vxpose.xlu0.b32.cont [6/16] 0.0, 128
        %1182 = vxpose.xlu0.b32.cont [7/16] 0.0, 128
        %1183 = vxpose.xlu0.b32.cont [8/16] 0.0, 128
        %1184 = vxpose.xlu0.b32.cont [9/16] 0.0, 128
        %1185 = vxpose.xlu0.b32.cont [10/16] 0.0, 128
        %1186 = vxpose.xlu0.b32.cont [11/16] 0.0, 128
        %1187 = vxpose.xlu0.b32.cont [12/16] 0.0, 128
        %1188 = vxpose.xlu0.b32.cont [13/16] 0.0, 128
        %1189 = vxpose.xlu0.b32.cont [14/16] 0.0, 128
        %1190 = vxpose.xlu0.b32.cont [15/16] 0.0, 128
        %1191 = vxpose.xlu0.b32.end [16/16] 0.0, 128
        %v1192 = vpop.trf.xlu0
        %v1193 = vpop.trf.xlu0
        %v1194 = vpop.trf.xlu0
        %v1195 = vpop.trf.xlu0
        %v1196 = vpop.trf.xlu0
        %v1197 = vpop.trf.xlu0
        %v1198 = vpop.trf.xlu0
        %v1199 = vpop.trf.xlu0
        %v1200 = vpop.trf.xlu0
        %v1201 = vpop.trf.xlu0
        %v1202 = vpop.trf.xlu0
        %v1203 = vpop.trf.xlu0
        %v1204 = vpop.trf.xlu0
        %v1205 = vpop.trf.xlu0
        %v1206 = vpop.trf.xlu0
        %v1207 = vpop.trf.xlu0
        %1208 = vxpose.xlu0.b32.start [1/16] %v1072, 128
        %1209 = vxpose.xlu0.b32.cont [2/16] %v1075, 128
        %1210 = vxpose.xlu0.b32.cont [3/16] %v1080, 128
        %1211 = vxpose.xlu0.b32.cont [4/16] %v1083, 128
        %1212 = vxpose.xlu0.b32.cont [5/16] 0.0, 128
        %1213 = vxpose.xlu0.b32.cont [6/16] 0.0, 128
        %1214 = vxpose.xlu0.b32.cont [7/16] 0.0, 128
        %1215 = vxpose.xlu0.b32.cont [8/16] 0.0, 128
        %1216 = vxpose.xlu0.b32.cont [9/16] 0.0, 128
        %1217 = vxpose.xlu0.b32.cont [10/16] 0.0, 128
        %1218 = vxpose.xlu0.b32.cont [11/16] 0.0, 128
        %1219 = vxpose.xlu0.b32.cont [12/16] 0.0, 128
        %1220 = vxpose.xlu0.b32.cont [13/16] 0.0, 128
        %1221 = vxpose.xlu0.b32.cont [14/16] 0.0, 128
        %1222 = vxpose.xlu0.b32.cont [15/16] 0.0, 128
        %1223 = vxpose.xlu0.b32.end [16/16] 0.0, 128
        %v1224 = vpop.trf.xlu0
        %v1225 = vpop.trf.xlu0
        %v1226 = vpop.trf.xlu0
        %v1227 = vpop.trf.xlu0
        %v1228 = vpop.trf.xlu0
        %v1229 = vpop.trf.xlu0
        %v1230 = vpop.trf.xlu0
        %v1231 = vpop.trf.xlu0
        %v1232 = vpop.trf.xlu0
        %v1233 = vpop.trf.xlu0
        %v1234 = vpop.trf.xlu0
        %v1235 = vpop.trf.xlu0
        %v1236 = vpop.trf.xlu0
        %v1237 = vpop.trf.xlu0
        %v1238 = vpop.trf.xlu0
        %v1239 = vpop.trf.xlu0
        %1240 = vxpose.xlu0.b32.start [1/16] %v1130, 128
        %1241 = vxpose.xlu0.b32.cont [2/16] %v1133, 128
        %1242 = vxpose.xlu0.b32.cont [3/16] %v1138, 128
        %1243 = vxpose.xlu0.b32.cont [4/16] %v1141, 128
        %1244 = vxpose.xlu0.b32.cont [5/16] 0.0, 128
        %1245 = vxpose.xlu0.b32.cont [6/16] 0.0, 128
        %1246 = vxpose.xlu0.b32.cont [7/16] 0.0, 128
        %1247 = vxpose.xlu0.b32.cont [8/16] 0.0, 128
        %1248 = vxpose.xlu0.b32.cont [9/16] 0.0, 128
        %1249 = vxpose.xlu0.b32.cont [10/16] 0.0, 128
        %1250 = vxpose.xlu0.b32.cont [11/16] 0.0, 128
        %1251 = vxpose.xlu0.b32.cont [12/16] 0.0, 128
        %1252 = vxpose.xlu0.b32.cont [13/16] 0.0, 128
        %1253 = vxpose.xlu0.b32.cont [14/16] 0.0, 128
        %1254 = vxpose.xlu0.b32.cont [15/16] 0.0, 128
        %1255 = vxpose.xlu0.b32.end [16/16] 0.0, 128
        %v1256 = vpop.trf.xlu0
        %v1257 = vpop.trf.xlu0
        %v1258 = vpop.trf.xlu0
        %v1259 = vpop.trf.xlu0
        %v1260 = vpop.trf.xlu0
        %v1261 = vpop.trf.xlu0
        %v1262 = vpop.trf.xlu0
        %v1263 = vpop.trf.xlu0
        %v1264 = vpop.trf.xlu0
        %v1265 = vpop.trf.xlu0
        %v1266 = vpop.trf.xlu0
        %v1267 = vpop.trf.xlu0
        %v1268 = vpop.trf.xlu0
        %v1269 = vpop.trf.xlu0
        %v1270 = vpop.trf.xlu0
        %v1271 = vpop.trf.xlu0
        %v1272 = vcombine.low %v1160, %v1224
        %v1273 = vcombine.high %v1160, %v1224
        %v1275 = vunpack.c.l.s4 1983009808
        %v1276 = vunpack.c.0.s8 %v1275
        %v1277 = vlaneseq
        %v1278 = vshrl.u32 %v1277, 7
        %v1279 = vsub.s32 %v1276, %v1278
        %v1280 = vrot.slane %v1272, %v1279
        %v1282 = vunpack.c.l.s4 1983009808
        %v1283 = vunpack.c.0.s8 %v1282
        %v1284 = vlaneseq
        %v1285 = vshrl.u32 %v1284, 7
        %v1286 = vsub.s32 %v1283, %v1285
        %v1287 = vrot.slane %v1273, %v1286
        %v1288 = vcombine.low %v1192, %v1256
        %v1289 = vcombine.high %v1192, %v1256
        %v1291 = vunpack.c.l.s4 1983009808
        %v1292 = vunpack.c.0.s8 %v1291
        %v1293 = vlaneseq
        %v1294 = vshrl.u32 %v1293, 7
        %v1295 = vsub.s32 %v1292, %v1294
        %v1296 = vrot.slane %v1288, %v1295
        %v1298 = vunpack.c.l.s4 1983009808
        %v1299 = vunpack.c.0.s8 %v1298
        %v1300 = vlaneseq
        %v1301 = vshrl.u32 %v1300, 7
        %v1302 = vsub.s32 %v1299, %v1301
        %v1303 = vrot.slane %v1289, %v1302
        %v1304 = vcombine.low %v1280, %v1296
        %v1305 = vcombine.high %v1280, %v1296
        %v1307 = vunpack.c.l.s4 1934713408
        %v1308 = vunpack.c.0.s8 %v1307
        %v1309 = vlaneseq
        %v1310 = vshrl.u32 %v1309, 7
        %v1311 = vsub.s32 %v1308, %v1310
        %v1312 = vrot.slane %v1304, %v1311
        %v1314 = vunpack.c.l.s4 1934713408
        %v1315 = vunpack.c.0.s8 %v1314
        %v1316 = vlaneseq
        %v1317 = vshrl.u32 %v1316, 7
        %v1318 = vsub.s32 %v1315, %v1317
        %v1319 = vrot.slane %v1305, %v1318
        %v1320 = vcombine.low %v1287, %v1303
        %v1321 = vcombine.high %v1287, %v1303
        %v1323 = vunpack.c.l.s4 1934713408
        %v1324 = vunpack.c.0.s8 %v1323
        %v1325 = vlaneseq
        %v1326 = vshrl.u32 %v1325, 7
        %v1327 = vsub.s32 %v1324, %v1326
        %v1328 = vrot.slane %v1320, %v1327
        %v1330 = vunpack.c.l.s4 1934713408
        %v1331 = vunpack.c.0.s8 %v1330
        %v1332 = vlaneseq
        %v1333 = vshrl.u32 %v1332, 7
        %v1334 = vsub.s32 %v1331, %v1333
        %v1335 = vrot.slane %v1321, %v1334
        %v1336 = vcombine.high %v1312, 0.0
        %v1337 = vcombine.high %v1319, 0.0
        %v1338 = vcombine.high %v1328, 0.0
        %v1339 = vcombine.high %v1335, 0.0
        %v1340 = vcombine.low %v1312, %v1319
        %v1342 = vunpack.c.l.s4 1983009808
        %v1343 = vunpack.c.0.s8 %v1342
        %v1344 = vlaneseq
        %v1345 = vshrl.u32 %v1344, 7
        %v1346 = vsub.s32 %v1343, %v1345
        %v1347 = vrot.slane %v1340, %v1346
        %v1348 = vcombine.low %v1336, %v1337
        %v1350 = vunpack.c.l.s4 1983009808
        %v1351 = vunpack.c.0.s8 %v1350
        %v1352 = vlaneseq
        %v1353 = vshrl.u32 %v1352, 7
        %v1354 = vsub.s32 %v1351, %v1353
        %v1355 = vrot.slane %v1348, %v1354
        %v1356 = vcombine.low %v1328, %v1335
        %v1358 = vunpack.c.l.s4 1983009808
        %v1359 = vunpack.c.0.s8 %v1358
        %v1360 = vlaneseq
        %v1361 = vshrl.u32 %v1360, 7
        %v1362 = vsub.s32 %v1359, %v1361
        %v1363 = vrot.slane %v1356, %v1362
        %v1364 = vcombine.low %v1338, %v1339
        %v1366 = vunpack.c.l.s4 1983009808
        %v1367 = vunpack.c.0.s8 %v1366
        %v1368 = vlaneseq
        %v1369 = vshrl.u32 %v1368, 7
        %v1370 = vsub.s32 %v1367, %v1369
        %v1371 = vrot.slane %v1364, %v1370
        %v1372 = vcombine.low %v1347, %v1355
        %v1373 = vcombine.high %v1347, %v1355
        %v1375 = vunpack.c.l.s4 1934713408
        %v1376 = vunpack.c.0.s8 %v1375
        %v1377 = vlaneseq
        %v1378 = vshrl.u32 %v1377, 7
        %v1379 = vsub.s32 %v1376, %v1378
        %v1380 = vrot.slane %v1372, %v1379
        %v1382 = vunpack.c.l.s4 1934713408
        %v1383 = vunpack.c.0.s8 %v1382
        %v1384 = vlaneseq
        %v1385 = vshrl.u32 %v1384, 7
        %v1386 = vsub.s32 %v1383, %v1385
        %v1387 = vrot.slane %v1373, %v1386
        %v1388 = vcombine.low %v1363, %v1371
        %v1389 = vcombine.high %v1363, %v1371
        %v1391 = vunpack.c.l.s4 1934713408
        %v1392 = vunpack.c.0.s8 %v1391
        %v1393 = vlaneseq
        %v1394 = vshrl.u32 %v1393, 7
        %v1395 = vsub.s32 %v1392, %v1394
        %v1396 = vrot.slane %v1388, %v1395
        %v1398 = vunpack.c.l.s4 1934713408
        %v1399 = vunpack.c.0.s8 %v1398
        %v1400 = vlaneseq
        %v1401 = vshrl.u32 %v1400, 7
        %v1402 = vsub.s32 %v1399, %v1401
        %v1403 = vrot.slane %v1389, %v1402
        %v1404 = vcombine.low %v1380, %v1396
        %v1405 = vcombine.high %v1380, %v1396
        %v1406 = vcombine.low %v1387, %v1403
        %v1407 = vcombine.high %v1387, %v1403
        %1409 = vrot.lane.b32.xlu0 %v1405, 32
        %v1410 = vpop.permute.xlu0 %1409
        %1413 = vrot.lane.b32.xlu0 %v1406, 64
        %v1414 = vpop.permute.xlu0 %1413
        %1417 = vrot.lane.b32.xlu0 %v1407, 96
        %v1418 = vpop.permute.xlu0 %1417
        %v1420 = vsel %vm626, %v1404, %v1410
        %vm1421 = vcmask 523264
        %v1422 = vsel %vm1421, %v1420, %v1414
        %vm1423 = vcmask 785408
        %v1424 = vsel %vm1423, %v1422, %v1418
        %v1425 = vpack.c.bf16 %v1424, %v1424
        %v1426 = vld [vmem:[%s3] sm:$0xf]
        %v1427 = vld [vmem:[%s3 + $0x4] sm:$0xf]
        %v1428 = vld [vmem:[%s3 + $0x8] sm:$0xf]
        %v1429 = vld [vmem:[%s3 + $0xc] sm:$0xf]
        %v1430 = vld [vmem:[%s3 + $0x10] sm:$0xf]
        %v1431 = vld [vmem:[%s3 + $0x14] sm:$0xf]
        %v1432 = vld [vmem:[%s3 + $0x18] sm:$0xf]
        %v1433 = vld [vmem:[%s3 + $0x1c] sm:$0xf]
        %v1434 = vld [vmem:[%s3 + $0x20] sm:$0xf]
        %v1435 = vld [vmem:[%s3 + $0x24] sm:$0xf]
        %v1436 = vld [vmem:[%s3 + $0x28] sm:$0xf]
        %v1437 = vld [vmem:[%s3 + $0x2c] sm:$0xf]
        %v1438 = vld [vmem:[%s3 + $0x30] sm:$0xf]
        %v1439 = vld [vmem:[%s3 + $0x34] sm:$0xf]
        %v1440 = vld [vmem:[%s3 + $0x38] sm:$0xf]
        %v1441 = vld [vmem:[%s3 + $0x3c] sm:$0xf]
        %v1442 = vld [vmem:[%s4] sm:$0x1]
        %v1444 = vlaneseq
        %v1445 = vshrl.u32 %v1444, 7
        %v1446 = vsub.s32 0, %v1445
        %v1447 = vrot.slane %v1442, %v1446
        %v1465 = vunpack.c.l.b16 %v1426
        %v1466 = vunpack.c.l.b16 %v1427
        %v1467 = vunpack.c.l.b16 %v1428
        %v1468 = vunpack.c.l.b16 %v1429
        %v1469 = vunpack.c.l.b16 %v1430
        %v1470 = vunpack.c.l.b16 %v1431
        %v1471 = vunpack.c.l.b16 %v1432
        %v1472 = vunpack.c.l.b16 %v1433
        %v1473 = vunpack.c.l.b16 %v1434
        %v1474 = vunpack.c.l.b16 %v1435
        %v1475 = vunpack.c.l.b16 %v1436
        %v1476 = vunpack.c.l.b16 %v1437
        %v1477 = vunpack.c.l.b16 %v1438
        %v1478 = vunpack.c.l.b16 %v1439
        %v1479 = vunpack.c.l.b16 %v1440
        %v1480 = vunpack.c.l.b16 %v1441
        %v1481 = vpack.c.b16 %v1466, %v1465
        %v1482 = vpack.c.b16 %v1468, %v1467
        %v1483 = vpack.c.b16 %v1470, %v1469
        %v1484 = vpack.c.b16 %v1472, %v1471
        %v1485 = vpack.c.b16 %v1474, %v1473
        %v1486 = vpack.c.b16 %v1476, %v1475
        %v1487 = vpack.c.b16 %v1478, %v1477
        %v1488 = vpack.c.b16 %v1480, %v1479
        %1497 = vmatprep.subr.bf16.mxu0 0
        %1498 = vmatpush1.bf16.msra.mxu0 %v1488
        %1499 = vmatprep.subr.bf16.mxu0 0
        %1500 = vmatpush1.bf16.msra.mxu0 %v1487
        %1501 = vmatprep.subr.bf16.mxu0 0
        %1502 = vmatpush1.bf16.msra.mxu0 %v1486
        %1503 = vmatprep.subr.bf16.mxu0 0
        %1504 = vmatpush1.bf16.msra.mxu0 %v1485
        %1505 = vmatprep.subr.bf16.mxu0 0
        %1506 = vmatpush1.bf16.msra.mxu0 %v1484
        %1507 = vmatprep.subr.bf16.mxu0 0
        %1508 = vmatpush1.bf16.msra.mxu0 %v1483
        %1509 = vmatprep.subr.bf16.mxu0 0
        %1510 = vmatpush1.bf16.msra.mxu0 %v1482
        %1511 = vmatprep.subr.bf16.mxu0 0
        %1512 = vmatpush1.bf16.msra.mxu0 %v1481
        %1513 = vmatprep.subr.bf16.mxu0 0
        %1514 = vmatpush2.bf16.msra.mxu0 0
        %1515 = vmatprep.subr.bf16.mxu0 0
        %1516 = vmatpush2.bf16.msra.mxu0 0
        %1517 = vmatprep.subr.bf16.mxu0 0
        %1518 = vmatpush2.bf16.msra.mxu0 0
        %1519 = vmatprep.subr.bf16.mxu0 0
        %1520 = vmatpush2.bf16.msra.mxu0 0
        %1521 = vmatprep.subr.bf16.mxu0 0
        %1522 = vmatpush2.bf16.msra.mxu0 0
        %1523 = vmatprep.subr.bf16.mxu0 0
        %1524 = vmatpush2.bf16.msra.mxu0 0
        %1525 = vmatprep.subr.bf16.mxu0 0
        %1526 = vmatpush2.bf16.msra.mxu0 0
        %1527 = vmatprep.subr.bf16.mxu0 0
        %1528 = vmatpush2.bf16.msra.mxu0 0
        %1529 = vmatprep.mubr.bf16.mxu0 0
        %1530 = vmatmul.mubr.bf16.gmra.mxu0 %v1425
        %v1531 = vpop.f32.mrf.mxu0
        %v1532 = vadd.f32 %v1447, %v1531
        %v1533 = vpop.f32.mrf.mxu0
        %v1534 = vpop.f32.mrf.mxu0
        %v1535 = vpop.f32.mrf.mxu0
        %1536 = vdwg.mxu0
        %1537 = vst [vmem:[%s270] sm:$0xff] %v1532
        %p1538 = scmp.lt.s32.totalorder %s21, 1
        %s1539 = scalar_select %p1538, %s21, 1
        %p1540 = scmp.lt.s32.totalorder %s22, 3
        %s1541 = scalar_select %p1540, %s22, 3
        %s1542 = smul.addr %s1539, 4
        %s1543 = sadd.s32 %s1541, %s1542
        %s1544 = smul.addr %s1543, 8
        %s1545 = scalar_lea.vmem %s5, %s1544
        // Predicated region
        $region45: #{sparse_mhat_forward.1} parent=39 // pred_check
          %p1546 = pneg %p161
        $region46: #{sparse_mhat_forward.1} parent=39 // pred_check_branch
          %1548 = sbr.rel (%p1546) target = $region48
        $region47: #{sparse_mhat_forward.1} parent=39 // pred_region
          _
        $region48: #{sparse_mhat_forward.1} parent=39 // pred_fallthru
          _
      $region40: #{sparse_mhat_forward.1} parent=5 // pred_fallthru
        _
      %p1549 = scmp.le.s32.totalorder 2, %s12
      // Predicated region
      $region49: #{sparse_mhat_forward.1} parent=5 // pred_check
        %p1550 = pneg %p1549
      $region50: #{sparse_mhat_forward.1} parent=5 // pred_check_branch
        %1552 = sbr.rel (%p1550) target = $region52
      $region51: #{sparse_mhat_forward.1} parent=5 // pred_region
        %s1553 = ssub.s32 %s12, 2
        // Predicated region
        $region53: #{sparse_mhat_forward.1} parent=51 // pred_check
          %p1554 = pneg %p167
        $region54: #{sparse_mhat_forward.1} parent=51 // pred_check_branch
          %1556 = sbr.rel (%p1554) target = $region56
        $region55: #{sparse_mhat_forward.1} parent=51 // pred_region
          %p1557 = scmp.lt.s32.totalorder %s23, 1
          %s1558 = scalar_select %p1557, %s23, 1
          %p1559 = scmp.lt.s32.totalorder %s24, 3
          %s1560 = scalar_select %p1559, %s24, 3
          %s1561 = smul.addr %s1558, 4
          %s1562 = sadd.s32 %s1560, %s1561
          %s1563 = smul.addr %s1562, 8
          %s1564 = scalar_lea.vmem %s5, %s1563
        $region56: #{sparse_mhat_forward.1} parent=51 // pred_fallthru
          _
      $region52: #{sparse_mhat_forward.1} parent=5 // pred_fallthru
        _
    $region6: #{sparse_mhat_forward.1} parent=1 // loop_footer
      %s16 = sadd.s32 1, %s12
    $region7: #{sparse_mhat_forward.1} parent=1 // loop_footer_branch
      %11 = sbr.rel target = $region3
    $region8: #{sparse_mhat_forward.1} parent=1 // loop_exit
      _
    %1565 = vsyncpa [#allocation3], 1
    %s1566 = scalar_lea.sflag [#allocation3], 1
    %1567 = vsyncpa %s1566, 1

</llo_original>
